<compile_context>
chip_gen: v7x
topology: tpu7x:2x2x1
jax: 0.10.0
libtpu: 0.0.40
codegen_flags: <defaults>
</compile_context>

<pallas_src>
import jax
import jax.numpy as jnp
from jax.experimental import pallas as pl
from jax.experimental.pallas import tpu as pltpu

NUM_CLASSES = 10
CLS_PAD = 16           # class-table rows / one-hot width, padded 10 -> 16
H1 = 1024
H2 = 512
H3 = 256
OUT_PAD = 128          # fc4 output (width 1) padded to a lane-dense 128
LEAKY_SLOPE = 0.2      # nn.LeakyReLU(0.2)


def _leaky_relu(x):
    # max(x, a*x) == LeakyReLU_a(x) only for 0 < a < 1 (true for 0.2);
    # one VALU op cheaper than where/select.
    return jnp.maximum(x, LEAKY_SLOPE * x)


def _round_up(x, m):
    return ((x + m - 1) // m) * m


def _pick_tm(batch):
    """Batch tile per chip generation (see header perf notes)."""
    if batch <= 128:
        return _round_up(max(batch, 1), 16)     # bf16 native sublane tile is 16
    try:
        kind = jax.devices()[0].device_kind.lower()
    except Exception:
        kind = ""
    if "v6" in kind and batch >= 256:
        return 256                              # fill the 2x256x256 MXU rows
    if "v7" in kind and batch >= 512:
        return 256                              # below 512 keep grid >= 2 for both TCs
    return 128                                  # v5e (4x128x128) / unknown


def cond_discriminator_kernel(x_ref, oh_ref, tcls_ref, w1_ref, w2_ref, b2_ref,
                              w3_ref, b3_ref, w4_ref, b4_ref, o_ref):
    """Fused 4-layer MLP head: (tm,K) -> 1024 -> 512 -> 256 -> 128(pad)."""
    # fc1: image-block matmul; label-embedding row + b1 come from the resident
    # (16,1024) class table via a tiny one-hot matmul (exact row selection).
    h = jnp.dot(x_ref[...], w1_ref[...], preferred_element_type=jnp.float32)
    h = h + jnp.dot(oh_ref[...], tcls_ref[...],
                    preferred_element_type=jnp.float32)
    h = _leaky_relu(h)
    # fc2
    h = jnp.dot(h.astype(jnp.bfloat16), w2_ref[...],
                preferred_element_type=jnp.float32) + b2_ref[...]
    h = _leaky_relu(h)
    # fc3
    h = jnp.dot(h.astype(jnp.bfloat16), w3_ref[...],
                preferred_element_type=jnp.float32) + b3_ref[...]
    h = _leaky_relu(h)
    # fc4 (columns padded to 128) + sigmoid: exp on EUP, reciprocal on EUP slot.
    logits = jnp.dot(h.astype(jnp.bfloat16), w4_ref[...],
                     preferred_element_type=jnp.float32) + b4_ref[...]
    e = jnp.exp(-logits)
    o_ref[...] = pl.reciprocal(1.0 + e, approx=True).astype(o_ref.dtype)


@jax.jit
def cond_discriminator_forward(im, labels, params):
    """im: (B, latent_dim) f32 latent vectors, labels: (B,) int32."""
    B, latent_dim = im.shape
    w1, b1 = params["w1"], params["b1"]          # (latent+10, 1024), (1, 1024)
    w2, b2 = params["w2"], params["b2"]          # (1024, 512), (1, 512)
    w3, b3 = params["w3"], params["b3"]          # (512, 256), (1, 256)
    w4, b4 = params["w4"], params["b4"]          # (256, 1),   (1, 1)

    bf16 = jnp.bfloat16

    # Resident (16, 1024) class table: emb @ W1[latent:, :] + b1 (b1 folded in).
    w1_im, w1_emb = w1[:latent_dim], w1[latent_dim:]
    tcls = params["emb"].astype(jnp.float32) @ w1_emb.astype(jnp.float32) + b1
    tcls = jnp.pad(tcls, ((0, CLS_PAD - NUM_CLASSES), (0, 0))).astype(bf16)

    # Tiny per-row one-hot (bf16) selects the class-table row inside the kernel.
    onehot = jax.nn.one_hot(labels, CLS_PAD, dtype=bf16)

    # Pad the first contraction dim (latent) to a multiple of 128 lanes.
    k_pad = _round_up(latent_dim, 128)
    x = im.astype(jnp.float32)
    if k_pad != latent_dim:
        x = jnp.pad(x, ((0, 0), (0, k_pad - latent_dim)))
        w1_im = jnp.pad(w1_im, ((0, k_pad - latent_dim), (0, 0)))

    # Batch tiling (chip-aware tm; padded rows have zero x and zero one-hot).
    tm = _pick_tm(B)
    b_pad = _round_up(B, tm)
    if b_pad != B:
        x = jnp.pad(x, ((0, b_pad - B), (0, 0)))
        onehot = jnp.pad(onehot, ((0, b_pad - B), (0, 0)))
    grid = (b_pad // tm,)

    # Pad fc4 columns 1 -> 128 so the output store is lane-dense.
    w4p = jnp.pad(w4, ((0, 0), (0, OUT_PAD - w4.shape[1])))
    b4p = jnp.pad(b4, ((0, 0), (0, OUT_PAD - b4.shape[1])))

    # bf16 MXU operands; bias adds stay f32.
    x_bf = x.astype(bf16)
    w1_bf, w2_bf, w3_bf, w4_bf = (w1_im.astype(bf16), w2.astype(bf16),
                                  w3.astype(bf16), w4p.astype(bf16))

    batch_spec = lambda cols: pl.BlockSpec((tm, cols), lambda i: (i, 0))
    # Grid-invariant blocks: constant index_map + single buffer (no dead copy).
    const_spec = lambda shape: pl.BlockSpec(shape, lambda i: (0, 0),
                                            pipeline_mode=pl.Buffered(1))

    out = pl.pallas_call(
        cond_discriminator_kernel,
        out_shape=jax.ShapeDtypeStruct((b_pad, OUT_PAD), bf16),
        grid=grid,
        in_specs=[
            batch_spec(k_pad),                       # x (bf16)
            batch_spec(CLS_PAD),                     # one-hot labels (bf16)
            const_spec((CLS_PAD, H1)),               # class table (bf16, resident)
            const_spec((k_pad, H1)),                 # W1 image block (bf16)
            const_spec((H1, H2)), const_spec((1, H2)),        # W2, b2
            const_spec((H2, H3)), const_spec((1, H3)),        # W3, b3
            const_spec((H3, OUT_PAD)), const_spec((1, OUT_PAD)),  # W4, b4 (padded)
        ],
        out_specs=batch_spec(OUT_PAD),
        compiler_params=pltpu.CompilerParams(
            dimension_semantics=("parallel",)),      # v7x: shard batch over 2 TCs
    )(x_bf, onehot, tcls, w1_bf, w2_bf, b2, w3_bf, b3, w4_bf, b4p)

    return out[:B, :1].astype(jnp.float32)


def init_params(key, latent_dim):
    """Deterministic params (PyTorch-style uniform fan-in init, W as (in, out))."""
    ks = jax.random.split(key, 9)

    def linear(kw, kb, fan_in, fan_out):
        bound = 1.0 / jnp.sqrt(float(fan_in))
        w = jax.random.uniform(kw, (fan_in, fan_out), jnp.float32, -bound, bound)
        b = jax.random.uniform(kb, (1, fan_out), jnp.float32, -bound, bound)
        return w, b

    emb = jax.random.normal(ks[0], (NUM_CLASSES, NUM_CLASSES), jnp.float32)
    w1, b1 = linear(ks[1], ks[2], latent_dim + NUM_CLASSES, H1)
    w2, b2 = linear(ks[3], ks[4], H1, H2)
    w3, b3 = linear(ks[5], ks[6], H2, H3)
    w4, b4 = linear(ks[7], ks[8], H3, 1)
    return {"emb": emb, "w1": w1, "b1": b1, "w2": w2, "b2": b2,
            "w3": w3, "b3": b3, "w4": w4, "b4": b4}


def reference_forward_f32(im, labels, params):
    """Pure-f32 reference faithful to the PyTorch module (eval mode)."""
    x = jnp.concatenate([im, jnp.take(params["emb"], labels, axis=0)], axis=1)
    h = _leaky_relu(x @ params["w1"] + params["b1"])
    h = _leaky_relu(h @ params["w2"] + params["b2"])
    h = _leaky_relu(h @ params["w3"] + params["b3"])
    return jax.nn.sigmoid(h @ params["w4"] + params["b4"])


def reference_forward_bf16(im, labels, params):
    """Reference mirroring the kernel's bf16-MXU / f32-accumulate math."""
    latent_dim = im.shape[1]
    bf16 = jnp.bfloat16
    w1_im, w1_emb = params["w1"][:latent_dim], params["w1"][latent_dim:]
    tcls = params["emb"] @ w1_emb + params["b1"]                     # (10, 1024)
    t = jnp.take(tcls.astype(bf16), labels, axis=0).astype(jnp.float32)
    h = _leaky_relu(jnp.dot(im.astype(bf16), w1_im.astype(bf16),
                            preferred_element_type=jnp.float32) + t)
    h = _leaky_relu(jnp.dot(h.astype(bf16), params["w2"].astype(bf16),
                            preferred_element_type=jnp.float32) + params["b2"])
    h = _leaky_relu(jnp.dot(h.astype(bf16), params["w3"].astype(bf16),
                            preferred_element_type=jnp.float32) + params["b3"])
    logits = jnp.dot(h.astype(bf16), params["w4"].astype(bf16),
                     preferred_element_type=jnp.float32) + params["b4"]
    return 1.0 / (1.0 + jnp.exp(-logits))


if __name__ == "__main__":
    latent_dim = 128
    batch = 2

    key = jax.random.PRNGKey(0)
    k_im, k_lab, k_par = jax.random.split(key, 3)

    # Latent vectors (the discriminator classifies latent-space vectors).
    im = jax.random.normal(k_im, (batch, latent_dim), jnp.float32)
    labels = jax.random.randint(k_lab, (batch,), 0, NUM_CLASSES, jnp.int32)
    params = init_params(k_par, latent_dim)

    out = cond_discriminator_forward(im, labels, params)
    out = jax.block_until_ready(out)
    assert out.shape == (batch, 1), out.shape

    ref_bf16 = reference_forward_bf16(im, labels, params)
    ref_f32 = reference_forward_f32(im, labels, params)
    # bf16 output store + approx reciprocal -> slightly looser bf16-ref tolerance.
    assert jnp.allclose(out, ref_bf16, atol=5e-3, rtol=5e-3), \
        float(jnp.max(jnp.abs(out - ref_bf16)))
    assert jnp.allclose(out, ref_f32, atol=3e-2, rtol=3e-2), \
        float(jnp.max(jnp.abs(out - ref_f32)))

    print("KERNEL_OK")
</pallas_src>

<mosaic_0001>
module attributes {stable_mosaic.version = 11 : i64} {
  func.func @cond_discriminator_kernel(%arg0: i32, %arg1: memref<16x128xbf16, #tpu.memory_space<vmem>>, %arg2: memref<16x16xbf16, #tpu.memory_space<vmem>>, %arg3: memref<16x1024xbf16, #tpu.memory_space<vmem>>, %arg4: memref<128x1024xbf16, #tpu.memory_space<vmem>>, %arg5: memref<1024x512xbf16, #tpu.memory_space<vmem>>, %arg6: memref<1x512xf32, #tpu.memory_space<vmem>>, %arg7: memref<512x256xbf16, #tpu.memory_space<vmem>>, %arg8: memref<1x256xf32, #tpu.memory_space<vmem>>, %arg9: memref<256x128xbf16, #tpu.memory_space<vmem>>, %arg10: memref<1x128xf32, #tpu.memory_space<vmem>>, %arg11: memref<16x128xbf16, #tpu.memory_space<vmem>>) attributes {dimension_semantics = [#tpu.dimension_semantics<parallel>], iteration_bounds = array<i64: 1>, scalar_prefetch = 0 : i64, scratch_operands = 0 : i64, tpu.core_type = #tpu.core_type<tc>, window_params = [{transform_indices = @transform_0, window_bounds = array<i64: 16, 128>}, {transform_indices = @transform_1, window_bounds = array<i64: 16, 16>}, {pipeline_mode = #tpu.pipeline_mode<synchronous>, transform_indices = @transform_2, window_bounds = array<i64: 16, 1024>}, {pipeline_mode = #tpu.pipeline_mode<synchronous>, transform_indices = @transform_3, window_bounds = array<i64: 128, 1024>}, {pipeline_mode = #tpu.pipeline_mode<synchronous>, transform_indices = @transform_4, window_bounds = array<i64: 1024, 512>}, {pipeline_mode = #tpu.pipeline_mode<synchronous>, transform_indices = @transform_5, window_bounds = array<i64: 1, 512>}, {pipeline_mode = #tpu.pipeline_mode<synchronous>, transform_indices = @transform_6, window_bounds = array<i64: 512, 256>}, {pipeline_mode = #tpu.pipeline_mode<synchronous>, transform_indices = @transform_7, window_bounds = array<i64: 1, 256>}, {pipeline_mode = #tpu.pipeline_mode<synchronous>, transform_indices = @transform_8, window_bounds = array<i64: 256, 128>}, {pipeline_mode = #tpu.pipeline_mode<synchronous>, transform_indices = @transform_9, window_bounds = array<i64: 1, 128>}, {transform_indices = @transform_10, window_bounds = array<i64: 16, 128>}]} {
    %c0 = arith.constant 0 : index
    %c0_0 = arith.constant 0 : index
    %0 = vector.load %arg1[%c0, %c0_0] : memref<16x128xbf16, #tpu.memory_space<vmem>>, vector<16x128xbf16>
    %c0_1 = arith.constant 0 : index
    %c0_2 = arith.constant 0 : index
    %1 = vector.load %arg4[%c0_1, %c0_2] : memref<128x1024xbf16, #tpu.memory_space<vmem>>, vector<128x1024xbf16>
    %cst = arith.constant dense<0.000000e+00> : vector<16x1024xf32>
    %2 = tpu.matmul %0, %1, %cst {dimension_numbers = #tpu.dot_dimension_numbers<[1], [0], [0], [1], [0, 0, 1, 1], [], []>} : vector<16x128xbf16>, vector<128x1024xbf16>, vector<16x1024xf32> -> vector<16x1024xf32>
    %c0_3 = arith.constant 0 : index
    %c0_4 = arith.constant 0 : index
    %3 = vector.load %arg2[%c0_3, %c0_4] : memref<16x16xbf16, #tpu.memory_space<vmem>>, vector<16x16xbf16>
    %c0_5 = arith.constant 0 : index
    %c0_6 = arith.constant 0 : index
    %4 = vector.load %arg3[%c0_5, %c0_6] : memref<16x1024xbf16, #tpu.memory_space<vmem>>, vector<16x1024xbf16>
    %cst_7 = arith.constant dense<0.000000e+00> : vector<16x1024xf32>
    %5 = tpu.matmul %3, %4, %cst_7 {dimension_numbers = #tpu.dot_dimension_numbers<[1], [0], [0], [1], [0, 0, 1, 1], [], []>} : vector<16x16xbf16>, vector<16x1024xbf16>, vector<16x1024xf32> -> vector<16x1024xf32>
    %6 = arith.addf %2, %5 : vector<16x1024xf32>
    %cst_8 = arith.constant 2.000000e-01 : f32
    %7 = vector.broadcast %cst_8 : f32 to vector<16x1024xf32>
    %8 = arith.mulf %7, %6 : vector<16x1024xf32>
    %9 = arith.maximumf %6, %8 : vector<16x1024xf32>
    %10 = arith.truncf %9 : vector<16x1024xf32> to vector<16x1024xbf16>
    %c0_9 = arith.constant 0 : index
    %c0_10 = arith.constant 0 : index
    %11 = vector.load %arg5[%c0_9, %c0_10] : memref<1024x512xbf16, #tpu.memory_space<vmem>>, vector<1024x512xbf16>
    %cst_11 = arith.constant dense<0.000000e+00> : vector<16x512xf32>
    %12 = tpu.matmul %10, %11, %cst_11 {dimension_numbers = #tpu.dot_dimension_numbers<[1], [0], [0], [1], [0, 0, 1, 1], [], []>} : vector<16x1024xbf16>, vector<1024x512xbf16>, vector<16x512xf32> -> vector<16x512xf32>
    %c0_12 = arith.constant 0 : index
    %c0_13 = arith.constant 0 : index
    %13 = vector.load %arg6[%c0_12, %c0_13] : memref<1x512xf32, #tpu.memory_space<vmem>>, vector<1x512xf32>
    %14 = vector.broadcast %13 : vector<1x512xf32> to vector<16x512xf32>
    %15 = arith.addf %12, %14 : vector<16x512xf32>
    %cst_14 = arith.constant 2.000000e-01 : f32
    %16 = vector.broadcast %cst_14 : f32 to vector<16x512xf32>
    %17 = arith.mulf %16, %15 : vector<16x512xf32>
    %18 = arith.maximumf %15, %17 : vector<16x512xf32>
    %19 = arith.truncf %18 : vector<16x512xf32> to vector<16x512xbf16>
    %c0_15 = arith.constant 0 : index
    %c0_16 = arith.constant 0 : index
    %20 = vector.load %arg7[%c0_15, %c0_16] : memref<512x256xbf16, #tpu.memory_space<vmem>>, vector<512x256xbf16>
    %cst_17 = arith.constant dense<0.000000e+00> : vector<16x256xf32>
    %21 = tpu.matmul %19, %20, %cst_17 {dimension_numbers = #tpu.dot_dimension_numbers<[1], [0], [0], [1], [0, 0, 1, 1], [], []>} : vector<16x512xbf16>, vector<512x256xbf16>, vector<16x256xf32> -> vector<16x256xf32>
    %c0_18 = arith.constant 0 : index
    %c0_19 = arith.constant 0 : index
    %22 = vector.load %arg8[%c0_18, %c0_19] : memref<1x256xf32, #tpu.memory_space<vmem>>, vector<1x256xf32>
    %23 = vector.broadcast %22 : vector<1x256xf32> to vector<16x256xf32>
    %24 = arith.addf %21, %23 : vector<16x256xf32>
    %cst_20 = arith.constant 2.000000e-01 : f32
    %25 = vector.broadcast %cst_20 : f32 to vector<16x256xf32>
    %26 = arith.mulf %25, %24 : vector<16x256xf32>
    %27 = arith.maximumf %24, %26 : vector<16x256xf32>
    %28 = arith.truncf %27 : vector<16x256xf32> to vector<16x256xbf16>
    %c0_21 = arith.constant 0 : index
    %c0_22 = arith.constant 0 : index
    %29 = vector.load %arg9[%c0_21, %c0_22] : memref<256x128xbf16, #tpu.memory_space<vmem>>, vector<256x128xbf16>
    %cst_23 = arith.constant dense<0.000000e+00> : vector<16x128xf32>
    %30 = tpu.matmul %28, %29, %cst_23 {dimension_numbers = #tpu.dot_dimension_numbers<[1], [0], [0], [1], [0, 0, 1, 1], [], []>} : vector<16x256xbf16>, vector<256x128xbf16>, vector<16x128xf32> -> vector<16x128xf32>
    %c0_24 = arith.constant 0 : index
    %c0_25 = arith.constant 0 : index
    %31 = vector.load %arg10[%c0_24, %c0_25] : memref<1x128xf32, #tpu.memory_space<vmem>>, vector<1x128xf32>
    %32 = vector.broadcast %31 : vector<1x128xf32> to vector<16x128xf32>
    %33 = arith.addf %30, %32 : vector<16x128xf32>
    %cst_26 = arith.constant 0.000000e+00 : f32
    %34 = vector.broadcast %cst_26 : f32 to vector<16x128xf32>
    %35 = arith.subf %34, %33 : vector<16x128xf32>
    %36 = math.exp %35 : vector<16x128xf32>
    %cst_27 = arith.constant 1.000000e+00 : f32
    %37 = vector.broadcast %cst_27 : f32 to vector<16x128xf32>
    %38 = arith.addf %37, %36 : vector<16x128xf32>
    %39 = tpu.reciprocal %38 {approx = true} : vector<16x128xf32> -> vector<16x128xf32>
    %40 = arith.truncf %39 : vector<16x128xf32> to vector<16x128xbf16>
    %c0_28 = arith.constant 0 : index
    %c0_29 = arith.constant 0 : index
    %41 = vector.load %arg11[%c0_28, %c0_29] : memref<16x128xbf16, #tpu.memory_space<vmem>>, vector<16x128xbf16>
    tpu.vector_store %arg11[%c0_28, %c0_29], %40 {strides = array<i32>} : memref<16x128xbf16, #tpu.memory_space<vmem>>, vector<16x128xbf16>,
    return
  }
  func.func @transform_0(%arg0: i32) -> (i32, i32) {
    %c0_i32 = arith.constant 0 : i32
    %c0_i32_0 = arith.constant 0 : i32
    return %arg0, %c0_i32 : i32, i32
  }
  func.func @transform_1(%arg0: i32) -> (i32, i32) {
    %c0_i32 = arith.constant 0 : i32
    %c0_i32_0 = arith.constant 0 : i32
    return %arg0, %c0_i32 : i32, i32
  }
  func.func @transform_2(%arg0: i32) -> (i32, i32) {
    %c0_i32 = arith.constant 0 : i32
    %c0_i32_0 = arith.constant 0 : i32
    %c0_i32_1 = arith.constant 0 : i32
    return %c0_i32, %c0_i32_0 : i32, i32
  }
  func.func @transform_3(%arg0: i32) -> (i32, i32) {
    %c0_i32 = arith.constant 0 : i32
    %c0_i32_0 = arith.constant 0 : i32
    %c0_i32_1 = arith.constant 0 : i32
    return %c0_i32, %c0_i32_0 : i32, i32
  }
  func.func @transform_4(%arg0: i32) -> (i32, i32) {
    %c0_i32 = arith.constant 0 : i32
    %c0_i32_0 = arith.constant 0 : i32
    %c0_i32_1 = arith.constant 0 : i32
    return %c0_i32, %c0_i32_0 : i32, i32
  }
  func.func @transform_5(%arg0: i32) -> (i32, i32) {
    %c0_i32 = arith.constant 0 : i32
    %c0_i32_0 = arith.constant 0 : i32
    %c0_i32_1 = arith.constant 0 : i32
    return %c0_i32, %c0_i32_0 : i32, i32
  }
  func.func @transform_6(%arg0: i32) -> (i32, i32) {
    %c0_i32 = arith.constant 0 : i32
    %c0_i32_0 = arith.constant 0 : i32
    %c0_i32_1 = arith.constant 0 : i32
    return %c0_i32, %c0_i32_0 : i32, i32
  }
  func.func @transform_7(%arg0: i32) -> (i32, i32) {
    %c0_i32 = arith.constant 0 : i32
    %c0_i32_0 = arith.constant 0 : i32
    %c0_i32_1 = arith.constant 0 : i32
    return %c0_i32, %c0_i32_0 : i32, i32
  }
  func.func @transform_8(%arg0: i32) -> (i32, i32) {
    %c0_i32 = arith.constant 0 : i32
    %c0_i32_0 = arith.constant 0 : i32
    %c0_i32_1 = arith.constant 0 : i32
    return %c0_i32, %c0_i32_0 : i32, i32
  }
  func.func @transform_9(%arg0: i32) -> (i32, i32) {
    %c0_i32 = arith.constant 0 : i32
    %c0_i32_0 = arith.constant 0 : i32
    %c0_i32_1 = arith.constant 0 : i32
    return %c0_i32, %c0_i32_0 : i32, i32
  }
  func.func @transform_10(%arg0: i32) -> (i32, i32) {
    %c0_i32 = arith.constant 0 : i32
    %c0_i32_0 = arith.constant 0 : i32
    return %arg0, %c0_i32 : i32, i32
  }
}

</mosaic_0001>

<llo_original>
// kernel: cond_discriminator_forward.1
$region0: #{cond_discriminator_forward.1}
  #allocation0 [shape = 'u32[]', space=smem, size = 0x4, offset = 0x4, fixed_abs, tag = 'smem constant byte address 0x4 - core index']
  #allocation1 [shape = 'u32[144,128]{1,0:T(1,128)}', space=vmem, size = 0x12000, scoped, tag = 'internal scratch']
  %s0 = inlined_call_operand.vmem [shape: bf16[16,128], index: 0, kind: input, shape index: {}]
  %s1 = inlined_call_operand.vmem [shape: bf16[16,16], index: 1, kind: input, shape index: {}]
  %s2 = inlined_call_operand.vmem [shape: bf16[16,1024], index: 2, kind: input, shape index: {}]
  %s3 = inlined_call_operand.vmem [shape: bf16[128,1024], index: 3, kind: input, shape index: {}]
  %s4 = inlined_call_operand.vmem [shape: bf16[1024,512], index: 4, kind: input, shape index: {}]
  %s5 = inlined_call_operand.vmem [shape: f32[1,512], index: 5, kind: input, shape index: {}]
  %s6 = inlined_call_operand.vmem [shape: bf16[512,256], index: 6, kind: input, shape index: {}]
  %s7 = inlined_call_operand.vmem [shape: f32[1,256], index: 7, kind: input, shape index: {}]
  %s8 = inlined_call_operand.vmem [shape: bf16[256,128], index: 8, kind: input, shape index: {}]
  %s9 = inlined_call_operand.vmem [shape: f32[1,128], index: 9, kind: input, shape index: {}]
  %s10 = inlined_call_operand.vmem [shape: bf16[16,128], index: 10, kind: output, shape index: {}]
  %s11 = sld [smem:[#allocation0]]
  $region50: #{cond_discriminator_forward.1} parent=0
    _
  %s13 = ssub.s32 1, %s11
  %s14 = scalar_select 0, %s13, %s11
  // Predicated region
  $region2: #{cond_discriminator_forward.1} parent=0 // pred_check
    _
  $region3: #{cond_discriminator_forward.1} parent=0 // pred_check_branch
    %16 = sbr.rel (0) target = $region5
  $region4: #{cond_discriminator_forward.1} parent=0 // pred_region
    _
  $region5: #{cond_discriminator_forward.1} parent=0 // pred_fallthru
    _
  // Predicated region
  $region6: #{cond_discriminator_forward.1} parent=0 // pred_check
    _
  $region7: #{cond_discriminator_forward.1} parent=0 // pred_check_branch
    %18 = sbr.rel (0) target = $region9
  $region8: #{cond_discriminator_forward.1} parent=0 // pred_region
    _
  $region9: #{cond_discriminator_forward.1} parent=0 // pred_fallthru
    _
  // Predicated region
  $region10: #{cond_discriminator_forward.1} parent=0 // pred_check
    _
  $region11: #{cond_discriminator_forward.1} parent=0 // pred_check_branch
    %20 = sbr.rel (0) target = $region13
  $region12: #{cond_discriminator_forward.1} parent=0 // pred_region
    _
  $region13: #{cond_discriminator_forward.1} parent=0 // pred_fallthru
    _
  // Predicated region
  $region14: #{cond_discriminator_forward.1} parent=0 // pred_check
    _
  $region15: #{cond_discriminator_forward.1} parent=0 // pred_check_branch
    %22 = sbr.rel (0) target = $region17
  $region16: #{cond_discriminator_forward.1} parent=0 // pred_region
    _
  $region17: #{cond_discriminator_forward.1} parent=0 // pred_fallthru
    _
  // Predicated region
  $region18: #{cond_discriminator_forward.1} parent=0 // pred_check
    _
  $region19: #{cond_discriminator_forward.1} parent=0 // pred_check_branch
    %24 = sbr.rel (0) target = $region21
  $region20: #{cond_discriminator_forward.1} parent=0 // pred_region
    _
  $region21: #{cond_discriminator_forward.1} parent=0 // pred_fallthru
    _
  // Predicated region
  $region22: #{cond_discriminator_forward.1} parent=0 // pred_check
    _
  $region23: #{cond_discriminator_forward.1} parent=0 // pred_check_branch
    %26 = sbr.rel (0) target = $region25
  $region24: #{cond_discriminator_forward.1} parent=0 // pred_region
    _
  $region25: #{cond_discriminator_forward.1} parent=0 // pred_fallthru
    _
  // Predicated region
  $region26: #{cond_discriminator_forward.1} parent=0 // pred_check
    _
  $region27: #{cond_discriminator_forward.1} parent=0 // pred_check_branch
    %28 = sbr.rel (0) target = $region29
  $region28: #{cond_discriminator_forward.1} parent=0 // pred_region
    _
  $region29: #{cond_discriminator_forward.1} parent=0 // pred_fallthru
    _
  // Predicated region
  $region30: #{cond_discriminator_forward.1} parent=0 // pred_check
    _
  $region31: #{cond_discriminator_forward.1} parent=0 // pred_check_branch
    %30 = sbr.rel (0) target = $region33
  $region32: #{cond_discriminator_forward.1} parent=0 // pred_region
    _
  $region33: #{cond_discriminator_forward.1} parent=0 // pred_fallthru
    _
  // Predicated region
  $region34: #{cond_discriminator_forward.1} parent=0 // pred_check
    _
  $region35: #{cond_discriminator_forward.1} parent=0 // pred_check_branch
    %32 = sbr.rel (0) target = $region37
  $region36: #{cond_discriminator_forward.1} parent=0 // pred_region
    _
  $region37: #{cond_discriminator_forward.1} parent=0 // pred_fallthru
    _
  // Predicated region
  $region38: #{cond_discriminator_forward.1} parent=0 // pred_check
    _
  $region39: #{cond_discriminator_forward.1} parent=0 // pred_check_branch
    %34 = sbr.rel (0) target = $region41
  $region40: #{cond_discriminator_forward.1} parent=0 // pred_region
    _
  $region41: #{cond_discriminator_forward.1} parent=0 // pred_fallthru
    _
  %v36 = vld [vmem:[%s0] sm:$0xf]
  %v37 = vld [vmem:[%s0 + $0x4] sm:$0xf]
  %v38 = vld [vmem:[%s3] sm:$0xff]
  %v39 = vld [vmem:[%s3 + $0x8] sm:$0xff]
  %v40 = vld [vmem:[%s3 + $0x10] sm:$0xff]
  %v41 = vld [vmem:[%s3 + $0x18] sm:$0xff]
  %v42 = vld [vmem:[%s3 + $0x20] sm:$0xff]
  %v43 = vld [vmem:[%s3 + $0x28] sm:$0xff]
  %v44 = vld [vmem:[%s3 + $0x30] sm:$0xff]
  %v45 = vld [vmem:[%s3 + $0x38] sm:$0xff]
  %v46 = vld [vmem:[%s3 + $0x40] sm:$0xff]
  %v47 = vld [vmem:[%s3 + $0x48] sm:$0xff]
  %v48 = vld [vmem:[%s3 + $0x50] sm:$0xff]
  %v49 = vld [vmem:[%s3 + $0x58] sm:$0xff]
  %v50 = vld [vmem:[%s3 + $0x60] sm:$0xff]
  %v51 = vld [vmem:[%s3 + $0x68] sm:$0xff]
  %v52 = vld [vmem:[%s3 + $0x70] sm:$0xff]
  %v53 = vld [vmem:[%s3 + $0x78] sm:$0xff]
  %v54 = vld [vmem:[%s3 + $0x80] sm:$0xff]
  %v55 = vld [vmem:[%s3 + $0x88] sm:$0xff]
  %v56 = vld [vmem:[%s3 + $0x90] sm:$0xff]
  %v57 = vld [vmem:[%s3 + $0x98] sm:$0xff]
  %v58 = vld [vmem:[%s3 + $0xa0] sm:$0xff]
  %v59 = vld [vmem:[%s3 + $0xa8] sm:$0xff]
  %v60 = vld [vmem:[%s3 + $0xb0] sm:$0xff]
  %v61 = vld [vmem:[%s3 + $0xb8] sm:$0xff]
  %v62 = vld [vmem:[%s3 + $0xc0] sm:$0xff]
  %v63 = vld [vmem:[%s3 + $0xc8] sm:$0xff]
  %v64 = vld [vmem:[%s3 + $0xd0] sm:$0xff]
  %v65 = vld [vmem:[%s3 + $0xd8] sm:$0xff]
  %v66 = vld [vmem:[%s3 + $0xe0] sm:$0xff]
  %v67 = vld [vmem:[%s3 + $0xe8] sm:$0xff]
  %v68 = vld [vmem:[%s3 + $0xf0] sm:$0xff]
  %v69 = vld [vmem:[%s3 + $0xf8] sm:$0xff]
  %v70 = vld [vmem:[%s3 + $0x100] sm:$0xff]
  %v71 = vld [vmem:[%s3 + $0x108] sm:$0xff]
  %v72 = vld [vmem:[%s3 + $0x110] sm:$0xff]
  %v73 = vld [vmem:[%s3 + $0x118] sm:$0xff]
  %v74 = vld [vmem:[%s3 + $0x120] sm:$0xff]
  %v75 = vld [vmem:[%s3 + $0x128] sm:$0xff]
  %v76 = vld [vmem:[%s3 + $0x130] sm:$0xff]
  %v77 = vld [vmem:[%s3 + $0x138] sm:$0xff]
  %v78 = vld [vmem:[%s3 + $0x140] sm:$0xff]
  %v79 = vld [vmem:[%s3 + $0x148] sm:$0xff]
  %v80 = vld [vmem:[%s3 + $0x150] sm:$0xff]
  %v81 = vld [vmem:[%s3 + $0x158] sm:$0xff]
  %v82 = vld [vmem:[%s3 + $0x160] sm:$0xff]
  %v83 = vld [vmem:[%s3 + $0x168] sm:$0xff]
  %v84 = vld [vmem:[%s3 + $0x170] sm:$0xff]
  %v85 = vld [vmem:[%s3 + $0x178] sm:$0xff]
  %v86 = vld [vmem:[%s3 + $0x180] sm:$0xff]
  %v87 = vld [vmem:[%s3 + $0x188] sm:$0xff]
  %v88 = vld [vmem:[%s3 + $0x190] sm:$0xff]
  %v89 = vld [vmem:[%s3 + $0x198] sm:$0xff]
  %v90 = vld [vmem:[%s3 + $0x1a0] sm:$0xff]
  %v91 = vld [vmem:[%s3 + $0x1a8] sm:$0xff]
  %v92 = vld [vmem:[%s3 + $0x1b0] sm:$0xff]
  %v93 = vld [vmem:[%s3 + $0x1b8] sm:$0xff]
  %v94 = vld [vmem:[%s3 + $0x1c0] sm:$0xff]
  %v95 = vld [vmem:[%s3 + $0x1c8] sm:$0xff]
  %v96 = vld [vmem:[%s3 + $0x1d0] sm:$0xff]
  %v97 = vld [vmem:[%s3 + $0x1d8] sm:$0xff]
  %v98 = vld [vmem:[%s3 + $0x1e0] sm:$0xff]
  %v99 = vld [vmem:[%s3 + $0x1e8] sm:$0xff]
  %v100 = vld [vmem:[%s3 + $0x1f0] sm:$0xff]
  %v101 = vld [vmem:[%s3 + $0x1f8] sm:$0xff]
  %v102 = vld [vmem:[%s1] sm:$0xf]
  %v103 = vld [vmem:[%s1 + $0x4] sm:$0xf]
  %v104 = vld [vmem:[%s2] sm:$0xff]
  %v105 = vld [vmem:[%s2 + $0x8] sm:$0xff]
  %v106 = vld [vmem:[%s2 + $0x10] sm:$0xff]
  %v107 = vld [vmem:[%s2 + $0x18] sm:$0xff]
  %v108 = vld [vmem:[%s2 + $0x20] sm:$0xff]
  %v109 = vld [vmem:[%s2 + $0x28] sm:$0xff]
  %v110 = vld [vmem:[%s2 + $0x30] sm:$0xff]
  %v111 = vld [vmem:[%s2 + $0x38] sm:$0xff]
  %v114 = vunpack.c.l.b16 %v102
  %v115 = vunpack.c.l.b16 %v103
  %v116 = vpack.c.b16 %v115, %v114
  %v125 = vunpack.c.l.b16 %v104
  %v126 = vunpack.c.h.b16 %v104
  %v127 = vunpack.c.l.b16 %v105
  %v128 = vunpack.c.h.b16 %v105
  %v129 = vunpack.c.l.b16 %v106
  %v130 = vunpack.c.h.b16 %v106
  %v131 = vunpack.c.l.b16 %v107
  %v132 = vunpack.c.h.b16 %v107
  %v133 = vunpack.c.l.b16 %v108
  %v134 = vunpack.c.h.b16 %v108
  %v135 = vunpack.c.l.b16 %v109
  %v136 = vunpack.c.h.b16 %v109
  %v137 = vunpack.c.l.b16 %v110
  %v138 = vunpack.c.h.b16 %v110
  %v139 = vunpack.c.l.b16 %v111
  %v140 = vunpack.c.h.b16 %v111
  %v141 = vpack.c.b16 %v133, %v125
  %v142 = vpack.c.b16 %v134, %v126
  %v143 = vpack.c.b16 %v135, %v127
  %v144 = vpack.c.b16 %v136, %v128
  %v145 = vpack.c.b16 %v137, %v129
  %v146 = vpack.c.b16 %v138, %v130
  %v147 = vpack.c.b16 %v139, %v131
  %v148 = vpack.c.b16 %v140, %v132
  %vm157 = vcmask 130048
  %v159 = vsel %vm157, %v116, 0
  %161 = vmatprep.subr.bf16.mxu0 %v142
  %162 = vmatpush1.bf16.msra.mxu0 %v141
  %163 = vmatprep.subr.bf16.mxu0 0
  %164 = vmatpush1.bf16.msra.mxu0 0
  %165 = vmatprep.subr.bf16.mxu0 0
  %166 = vmatpush1.bf16.msra.mxu0 0
  %167 = vmatprep.subr.bf16.mxu0 0
  %168 = vmatpush1.bf16.msra.mxu0 0
  %169 = vmatprep.subr.bf16.mxu0 0
  %170 = vmatpush1.bf16.msra.mxu0 0
  %171 = vmatprep.subr.bf16.mxu0 0
  %172 = vmatpush1.bf16.msra.mxu0 0
  %173 = vmatprep.subr.bf16.mxu0 0
  %174 = vmatpush1.bf16.msra.mxu0 0
  %175 = vmatprep.subr.bf16.mxu0 0
  %176 = vmatpush1.bf16.msra.mxu0 0
  %177 = vmatprep.subr.bf16.mxu0 0
  %178 = vmatpush1.bf16.msra.mxu0 0
  %179 = vmatprep.subr.bf16.mxu0 0
  %180 = vmatpush1.bf16.msra.mxu0 0
  %181 = vmatprep.subr.bf16.mxu0 0
  %182 = vmatpush1.bf16.msra.mxu0 0
  %183 = vmatprep.subr.bf16.mxu0 0
  %184 = vmatpush1.bf16.msra.mxu0 0
  %185 = vmatprep.subr.bf16.mxu0 0
  %186 = vmatpush1.bf16.msra.mxu0 0
  %187 = vmatprep.subr.bf16.mxu0 0
  %188 = vmatpush1.bf16.msra.mxu0 0
  %189 = vmatprep.subr.bf16.mxu0 0
  %190 = vmatpush1.bf16.msra.mxu0 0
  %191 = vmatprep.subr.bf16.mxu0 0
  %192 = vmatpush1.bf16.msra.mxu0 0
  %193 = vmatprep.mubr.bf16.mxu0 0
  %194 = vmatmul.mubr.bf16.gmra.mrb[0].mxu0 %v159
  %v195 = vpop.f32.mrb[0].mxu0
  %v196 = vadd.f32 0.0, %v195
  %v197 = vpop.f32.mrb[0].mxu0
  %v198 = vadd.f32 0.0, %v197
  %v199 = vpop.f32.mrb[0].mxu0
  %v200 = vadd.f32 0.0, %v199
  %v201 = vpop.f32.mrb[0].mxu0
  %v202 = vadd.f32 0.0, %v201
  %203 = vdwg.mxu0
  %204 = vmatprep.subr.bf16.mxu0 %v144
  %205 = vmatpush1.bf16.msra.mxu0 %v143
  %206 = vmatprep.subr.bf16.mxu0 0
  %207 = vmatpush1.bf16.msra.mxu0 0
  %208 = vmatprep.subr.bf16.mxu0 0
  %209 = vmatpush1.bf16.msra.mxu0 0
  %210 = vmatprep.subr.bf16.mxu0 0
  %211 = vmatpush1.bf16.msra.mxu0 0
  %212 = vmatprep.subr.bf16.mxu0 0
  %213 = vmatpush1.bf16.msra.mxu0 0
  %214 = vmatprep.subr.bf16.mxu0 0
  %215 = vmatpush1.bf16.msra.mxu0 0
  %216 = vmatprep.subr.bf16.mxu0 0
  %217 = vmatpush1.bf16.msra.mxu0 0
  %218 = vmatprep.subr.bf16.mxu0 0
  %219 = vmatpush1.bf16.msra.mxu0 0
  %220 = vmatprep.subr.bf16.mxu0 0
  %221 = vmatpush1.bf16.msra.mxu0 0
  %222 = vmatprep.subr.bf16.mxu0 0
  %223 = vmatpush1.bf16.msra.mxu0 0
  %224 = vmatprep.subr.bf16.mxu0 0
  %225 = vmatpush1.bf16.msra.mxu0 0
  %226 = vmatprep.subr.bf16.mxu0 0
  %227 = vmatpush1.bf16.msra.mxu0 0
  %228 = vmatprep.subr.bf16.mxu0 0
  %229 = vmatpush1.bf16.msra.mxu0 0
  %230 = vmatprep.subr.bf16.mxu0 0
  %231 = vmatpush1.bf16.msra.mxu0 0
  %232 = vmatprep.subr.bf16.mxu0 0
  %233 = vmatpush1.bf16.msra.mxu0 0
  %234 = vmatprep.subr.bf16.mxu0 0
  %235 = vmatpush1.bf16.msra.mxu0 0
  %236 = vmatprep.mubr.bf16.mxu0 0
  %237 = vmatmul.mubr.bf16.gmra.mrb[0].mxu0 %v159
  %v238 = vpop.f32.mrb[0].mxu0
  %v239 = vadd.f32 0.0, %v238
  %v240 = vpop.f32.mrb[0].mxu0
  %v241 = vadd.f32 0.0, %v240
  %v242 = vpop.f32.mrb[0].mxu0
  %v243 = vadd.f32 0.0, %v242
  %v244 = vpop.f32.mrb[0].mxu0
  %v245 = vadd.f32 0.0, %v244
  %246 = vdwg.mxu0
  %247 = vmatprep.subr.bf16.mxu0 %v146
  %248 = vmatpush1.bf16.msra.mxu0 %v145
  %249 = vmatprep.subr.bf16.mxu0 0
  %250 = vmatpush1.bf16.msra.mxu0 0
  %251 = vmatprep.subr.bf16.mxu0 0
  %252 = vmatpush1.bf16.msra.mxu0 0
  %253 = vmatprep.subr.bf16.mxu0 0
  %254 = vmatpush1.bf16.msra.mxu0 0
  %255 = vmatprep.subr.bf16.mxu0 0
  %256 = vmatpush1.bf16.msra.mxu0 0
  %257 = vmatprep.subr.bf16.mxu0 0
  %258 = vmatpush1.bf16.msra.mxu0 0
  %259 = vmatprep.subr.bf16.mxu0 0
  %260 = vmatpush1.bf16.msra.mxu0 0
  %261 = vmatprep.subr.bf16.mxu0 0
  %262 = vmatpush1.bf16.msra.mxu0 0
  %263 = vmatprep.subr.bf16.mxu0 0
  %264 = vmatpush1.bf16.msra.mxu0 0
  %265 = vmatprep.subr.bf16.mxu0 0
  %266 = vmatpush1.bf16.msra.mxu0 0
  %267 = vmatprep.subr.bf16.mxu0 0
  %268 = vmatpush1.bf16.msra.mxu0 0
  %269 = vmatprep.subr.bf16.mxu0 0
  %270 = vmatpush1.bf16.msra.mxu0 0
  %271 = vmatprep.subr.bf16.mxu0 0
  %272 = vmatpush1.bf16.msra.mxu0 0
  %273 = vmatprep.subr.bf16.mxu0 0
  %274 = vmatpush1.bf16.msra.mxu0 0
  %275 = vmatprep.subr.bf16.mxu0 0
  %276 = vmatpush1.bf16.msra.mxu0 0
  %277 = vmatprep.subr.bf16.mxu0 0
  %278 = vmatpush1.bf16.msra.mxu0 0
  %279 = vmatprep.mubr.bf16.mxu0 0
  %280 = vmatmul.mubr.bf16.gmra.mrb[0].mxu0 %v159
  %v281 = vpop.f32.mrb[0].mxu0
  %v282 = vadd.f32 0.0, %v281
  %v283 = vpop.f32.mrb[0].mxu0
  %v284 = vadd.f32 0.0, %v283
  %v285 = vpop.f32.mrb[0].mxu0
  %v286 = vadd.f32 0.0, %v285
  %v287 = vpop.f32.mrb[0].mxu0
  %v288 = vadd.f32 0.0, %v287
  %289 = vdwg.mxu0
  %290 = vmatprep.subr.bf16.mxu0 %v148
  %291 = vmatpush1.bf16.msra.mxu0 %v147
  %292 = vmatprep.subr.bf16.mxu0 0
  %293 = vmatpush1.bf16.msra.mxu0 0
  %294 = vmatprep.subr.bf16.mxu0 0
  %295 = vmatpush1.bf16.msra.mxu0 0
  %296 = vmatprep.subr.bf16.mxu0 0
  %297 = vmatpush1.bf16.msra.mxu0 0
  %298 = vmatprep.subr.bf16.mxu0 0
  %299 = vmatpush1.bf16.msra.mxu0 0
  %300 = vmatprep.subr.bf16.mxu0 0
  %301 = vmatpush1.bf16.msra.mxu0 0
  %302 = vmatprep.subr.bf16.mxu0 0
  %303 = vmatpush1.bf16.msra.mxu0 0
  %304 = vmatprep.subr.bf16.mxu0 0
  %305 = vmatpush1.bf16.msra.mxu0 0
  %306 = vmatprep.subr.bf16.mxu0 0
  %307 = vmatpush1.bf16.msra.mxu0 0
  %308 = vmatprep.subr.bf16.mxu0 0
  %309 = vmatpush1.bf16.msra.mxu0 0
  %310 = vmatprep.subr.bf16.mxu0 0
  %311 = vmatpush1.bf16.msra.mxu0 0
  %312 = vmatprep.subr.bf16.mxu0 0
  %313 = vmatpush1.bf16.msra.mxu0 0
  %314 = vmatprep.subr.bf16.mxu0 0
  %315 = vmatpush1.bf16.msra.mxu0 0
  %316 = vmatprep.subr.bf16.mxu0 0
  %317 = vmatpush1.bf16.msra.mxu0 0
  %318 = vmatprep.subr.bf16.mxu0 0
  %319 = vmatpush1.bf16.msra.mxu0 0
  %320 = vmatprep.subr.bf16.mxu0 0
  %321 = vmatpush1.bf16.msra.mxu0 0
  %322 = vmatprep.mubr.bf16.mxu0 0
  %323 = vmatmul.mubr.bf16.gmra.mrb[0].mxu0 %v159
  %v324 = vpop.f32.mrb[0].mxu0
  %v325 = vadd.f32 0.0, %v324
  %v326 = vpop.f32.mrb[0].mxu0
  %v327 = vadd.f32 0.0, %v326
  %v328 = vpop.f32.mrb[0].mxu0
  %v329 = vadd.f32 0.0, %v328
  %v330 = vpop.f32.mrb[0].mxu0
  %v331 = vadd.f32 0.0, %v330
  %332 = vdwg.mxu0
  %v335 = vunpack.c.l.b16 %v36
  %v336 = vunpack.c.l.b16 %v37
  %v337 = vpack.c.b16 %v336, %v335
  %v403 = vunpack.c.l.b16 %v38
  %v404 = vunpack.c.h.b16 %v38
  %v405 = vunpack.c.l.b16 %v39
  %v406 = vunpack.c.h.b16 %v39
  %v407 = vunpack.c.l.b16 %v40
  %v408 = vunpack.c.h.b16 %v40
  %v409 = vunpack.c.l.b16 %v41
  %v410 = vunpack.c.h.b16 %v41
  %v411 = vunpack.c.l.b16 %v42
  %v412 = vunpack.c.h.b16 %v42
  %v413 = vunpack.c.l.b16 %v43
  %v414 = vunpack.c.h.b16 %v43
  %v415 = vunpack.c.l.b16 %v44
  %v416 = vunpack.c.h.b16 %v44
  %v417 = vunpack.c.l.b16 %v45
  %v418 = vunpack.c.h.b16 %v45
  %v419 = vunpack.c.l.b16 %v46
  %v420 = vunpack.c.h.b16 %v46
  %v421 = vunpack.c.l.b16 %v47
  %v422 = vunpack.c.h.b16 %v47
  %v423 = vunpack.c.l.b16 %v48
  %v424 = vunpack.c.h.b16 %v48
  %v425 = vunpack.c.l.b16 %v49
  %v426 = vunpack.c.h.b16 %v49
  %v427 = vunpack.c.l.b16 %v50
  %v428 = vunpack.c.h.b16 %v50
  %v429 = vunpack.c.l.b16 %v51
  %v430 = vunpack.c.h.b16 %v51
  %v431 = vunpack.c.l.b16 %v52
  %v432 = vunpack.c.h.b16 %v52
  %v433 = vunpack.c.l.b16 %v53
  %v434 = vunpack.c.h.b16 %v53
  %v435 = vunpack.c.l.b16 %v54
  %v436 = vunpack.c.h.b16 %v54
  %v437 = vunpack.c.l.b16 %v55
  %v438 = vunpack.c.h.b16 %v55
  %v439 = vunpack.c.l.b16 %v56
  %v440 = vunpack.c.h.b16 %v56
  %v441 = vunpack.c.l.b16 %v57
  %v442 = vunpack.c.h.b16 %v57
  %v443 = vunpack.c.l.b16 %v58
  %v444 = vunpack.c.h.b16 %v58
  %v445 = vunpack.c.l.b16 %v59
  %v446 = vunpack.c.h.b16 %v59
  %v447 = vunpack.c.l.b16 %v60
  %v448 = vunpack.c.h.b16 %v60
  %v449 = vunpack.c.l.b16 %v61
  %v450 = vunpack.c.h.b16 %v61
  %v451 = vunpack.c.l.b16 %v62
  %v452 = vunpack.c.h.b16 %v62
  %v453 = vunpack.c.l.b16 %v63
  %v454 = vunpack.c.h.b16 %v63
  %v455 = vunpack.c.l.b16 %v64
  %v456 = vunpack.c.h.b16 %v64
  %v457 = vunpack.c.l.b16 %v65
  %v458 = vunpack.c.h.b16 %v65
  %v459 = vunpack.c.l.b16 %v66
  %v460 = vunpack.c.h.b16 %v66
  %v461 = vunpack.c.l.b16 %v67
  %v462 = vunpack.c.h.b16 %v67
  %v463 = vunpack.c.l.b16 %v68
  %v464 = vunpack.c.h.b16 %v68
  %v465 = vunpack.c.l.b16 %v69
  %v466 = vunpack.c.h.b16 %v69
  %v467 = vunpack.c.l.b16 %v70
  %v468 = vunpack.c.h.b16 %v70
  %v469 = vunpack.c.l.b16 %v71
  %v470 = vunpack.c.h.b16 %v71
  %v471 = vunpack.c.l.b16 %v72
  %v472 = vunpack.c.h.b16 %v72
  %v473 = vunpack.c.l.b16 %v73
  %v474 = vunpack.c.h.b16 %v73
  %v475 = vunpack.c.l.b16 %v74
  %v476 = vunpack.c.h.b16 %v74
  %v477 = vunpack.c.l.b16 %v75
  %v478 = vunpack.c.h.b16 %v75
  %v479 = vunpack.c.l.b16 %v76
  %v480 = vunpack.c.h.b16 %v76
  %v481 = vunpack.c.l.b16 %v77
  %v482 = vunpack.c.h.b16 %v77
  %v483 = vunpack.c.l.b16 %v78
  %v484 = vunpack.c.h.b16 %v78
  %v485 = vunpack.c.l.b16 %v79
  %v486 = vunpack.c.h.b16 %v79
  %v487 = vunpack.c.l.b16 %v80
  %v488 = vunpack.c.h.b16 %v80
  %v489 = vunpack.c.l.b16 %v81
  %v490 = vunpack.c.h.b16 %v81
  %v491 = vunpack.c.l.b16 %v82
  %v492 = vunpack.c.h.b16 %v82
  %v493 = vunpack.c.l.b16 %v83
  %v494 = vunpack.c.h.b16 %v83
  %v495 = vunpack.c.l.b16 %v84
  %v496 = vunpack.c.h.b16 %v84
  %v497 = vunpack.c.l.b16 %v85
  %v498 = vunpack.c.h.b16 %v85
  %v499 = vunpack.c.l.b16 %v86
  %v500 = vunpack.c.h.b16 %v86
  %v501 = vunpack.c.l.b16 %v87
  %v502 = vunpack.c.h.b16 %v87
  %v503 = vunpack.c.l.b16 %v88
  %v504 = vunpack.c.h.b16 %v88
  %v505 = vunpack.c.l.b16 %v89
  %v506 = vunpack.c.h.b16 %v89
  %v507 = vunpack.c.l.b16 %v90
  %v508 = vunpack.c.h.b16 %v90
  %v509 = vunpack.c.l.b16 %v91
  %v510 = vunpack.c.h.b16 %v91
  %v511 = vunpack.c.l.b16 %v92
  %v512 = vunpack.c.h.b16 %v92
  %v513 = vunpack.c.l.b16 %v93
  %v514 = vunpack.c.h.b16 %v93
  %v515 = vunpack.c.l.b16 %v94
  %v516 = vunpack.c.h.b16 %v94
  %v517 = vunpack.c.l.b16 %v95
  %v518 = vunpack.c.h.b16 %v95
  %v519 = vunpack.c.l.b16 %v96
  %v520 = vunpack.c.h.b16 %v96
  %v521 = vunpack.c.l.b16 %v97
  %v522 = vunpack.c.h.b16 %v97
  %v523 = vunpack.c.l.b16 %v98
  %v524 = vunpack.c.h.b16 %v98
  %v525 = vunpack.c.l.b16 %v99
  %v526 = vunpack.c.h.b16 %v99
  %v527 = vunpack.c.l.b16 %v100
  %v528 = vunpack.c.h.b16 %v100
  %v529 = vunpack.c.l.b16 %v101
  %v530 = vunpack.c.h.b16 %v101
  %v531 = vpack.c.b16 %v411, %v403
  %v532 = vpack.c.b16 %v412, %v404
  %v533 = vpack.c.b16 %v413, %v405
  %v534 = vpack.c.b16 %v414, %v406
  %v535 = vpack.c.b16 %v415, %v407
  %v536 = vpack.c.b16 %v416, %v408
  %v537 = vpack.c.b16 %v417, %v409
  %v538 = vpack.c.b16 %v418, %v410
  %v539 = vpack.c.b16 %v427, %v419
  %v540 = vpack.c.b16 %v428, %v420
  %v541 = vpack.c.b16 %v429, %v421
  %v542 = vpack.c.b16 %v430, %v422
  %v543 = vpack.c.b16 %v431, %v423
  %v544 = vpack.c.b16 %v432, %v424
  %v545 = vpack.c.b16 %v433, %v425
  %v546 = vpack.c.b16 %v434, %v426
  %v547 = vpack.c.b16 %v443, %v435
  %v548 = vpack.c.b16 %v444, %v436
  %v549 = vpack.c.b16 %v445, %v437
  %v550 = vpack.c.b16 %v446, %v438
  %v551 = vpack.c.b16 %v447, %v439
  %v552 = vpack.c.b16 %v448, %v440
  %v553 = vpack.c.b16 %v449, %v441
  %v554 = vpack.c.b16 %v450, %v442
  %v555 = vpack.c.b16 %v459, %v451
  %v556 = vpack.c.b16 %v460, %v452
  %v557 = vpack.c.b16 %v461, %v453
  %v558 = vpack.c.b16 %v462, %v454
  %v559 = vpack.c.b16 %v463, %v455
  %v560 = vpack.c.b16 %v464, %v456
  %v561 = vpack.c.b16 %v465, %v457
  %v562 = vpack.c.b16 %v466, %v458
  %v563 = vpack.c.b16 %v475, %v467
  %v564 = vpack.c.b16 %v476, %v468
  %v565 = vpack.c.b16 %v477, %v469
  %v566 = vpack.c.b16 %v478, %v470
  %v567 = vpack.c.b16 %v479, %v471
  %v568 = vpack.c.b16 %v480, %v472
  %v569 = vpack.c.b16 %v481, %v473
  %v570 = vpack.c.b16 %v482, %v474
  %v571 = vpack.c.b16 %v491, %v483
  %v572 = vpack.c.b16 %v492, %v484
  %v573 = vpack.c.b16 %v493, %v485
  %v574 = vpack.c.b16 %v494, %v486
  %v575 = vpack.c.b16 %v495, %v487
  %v576 = vpack.c.b16 %v496, %v488
  %v577 = vpack.c.b16 %v497, %v489
  %v578 = vpack.c.b16 %v498, %v490
  %v579 = vpack.c.b16 %v507, %v499
  %v580 = vpack.c.b16 %v508, %v500
  %v581 = vpack.c.b16 %v509, %v501
  %v582 = vpack.c.b16 %v510, %v502
  %v583 = vpack.c.b16 %v511, %v503
  %v584 = vpack.c.b16 %v512, %v504
  %v585 = vpack.c.b16 %v513, %v505
  %v586 = vpack.c.b16 %v514, %v506
  %v587 = vpack.c.b16 %v523, %v515
  %v588 = vpack.c.b16 %v524, %v516
  %v589 = vpack.c.b16 %v525, %v517
  %v590 = vpack.c.b16 %v526, %v518
  %v591 = vpack.c.b16 %v527, %v519
  %v592 = vpack.c.b16 %v528, %v520
  %v593 = vpack.c.b16 %v529, %v521
  %v594 = vpack.c.b16 %v530, %v522
  %659 = vmatprep.subr.bf16.mxu0 %v532
  %660 = vmatpush1.bf16.msra.mxu0 %v531
  %661 = vmatprep.subr.bf16.mxu0 %v540
  %662 = vmatpush1.bf16.msra.mxu0 %v539
  %663 = vmatprep.subr.bf16.mxu0 %v548
  %664 = vmatpush1.bf16.msra.mxu0 %v547
  %665 = vmatprep.subr.bf16.mxu0 %v556
  %666 = vmatpush1.bf16.msra.mxu0 %v555
  %667 = vmatprep.subr.bf16.mxu0 %v564
  %668 = vmatpush1.bf16.msra.mxu0 %v563
  %669 = vmatprep.subr.bf16.mxu0 %v572
  %670 = vmatpush1.bf16.msra.mxu0 %v571
  %671 = vmatprep.subr.bf16.mxu0 %v580
  %672 = vmatpush1.bf16.msra.mxu0 %v579
  %673 = vmatprep.subr.bf16.mxu0 %v588
  %674 = vmatpush1.bf16.msra.mxu0 %v587
  %675 = vmatprep.subr.bf16.mxu0 0
  %676 = vmatpush1.bf16.msra.mxu0 0
  %677 = vmatprep.subr.bf16.mxu0 0
  %678 = vmatpush1.bf16.msra.mxu0 0
  %679 = vmatprep.subr.bf16.mxu0 0
  %680 = vmatpush1.bf16.msra.mxu0 0
  %681 = vmatprep.subr.bf16.mxu0 0
  %682 = vmatpush1.bf16.msra.mxu0 0
  %683 = vmatprep.subr.bf16.mxu0 0
  %684 = vmatpush1.bf16.msra.mxu0 0
  %685 = vmatprep.subr.bf16.mxu0 0
  %686 = vmatpush1.bf16.msra.mxu0 0
  %687 = vmatprep.subr.bf16.mxu0 0
  %688 = vmatpush1.bf16.msra.mxu0 0
  %689 = vmatprep.subr.bf16.mxu0 0
  %690 = vmatpush1.bf16.msra.mxu0 0
  %691 = vmatprep.mubr.bf16.mxu0 0
  %692 = vmatmul.mubr.bf16.gmra.mrb[0].mxu0 %v337
  %v693 = vpop.f32.mrb[0].mxu0
  %v694 = vadd.f32 %v196, %v693
  %v695 = vpop.f32.mrb[0].mxu0
  %v696 = vadd.f32 %v198, %v695
  %v697 = vpop.f32.mrb[0].mxu0
  %v698 = vadd.f32 %v200, %v697
  %v699 = vpop.f32.mrb[0].mxu0
  %v700 = vadd.f32 %v202, %v699
  %701 = vdwg.mxu0
  %702 = vmatprep.subr.bf16.mxu0 %v534
  %703 = vmatpush1.bf16.msra.mxu0 %v533
  %704 = vmatprep.subr.bf16.mxu0 %v542
  %705 = vmatpush1.bf16.msra.mxu0 %v541
  %706 = vmatprep.subr.bf16.mxu0 %v550
  %707 = vmatpush1.bf16.msra.mxu0 %v549
  %708 = vmatprep.subr.bf16.mxu0 %v558
  %709 = vmatpush1.bf16.msra.mxu0 %v557
  %710 = vmatprep.subr.bf16.mxu0 %v566
  %711 = vmatpush1.bf16.msra.mxu0 %v565
  %712 = vmatprep.subr.bf16.mxu0 %v574
  %713 = vmatpush1.bf16.msra.mxu0 %v573
  %714 = vmatprep.subr.bf16.mxu0 %v582
  %715 = vmatpush1.bf16.msra.mxu0 %v581
  %716 = vmatprep.subr.bf16.mxu0 %v590
  %717 = vmatpush1.bf16.msra.mxu0 %v589
  %718 = vmatprep.subr.bf16.mxu0 0
  %719 = vmatpush1.bf16.msra.mxu0 0
  %720 = vmatprep.subr.bf16.mxu0 0
  %721 = vmatpush1.bf16.msra.mxu0 0
  %722 = vmatprep.subr.bf16.mxu0 0
  %723 = vmatpush1.bf16.msra.mxu0 0
  %724 = vmatprep.subr.bf16.mxu0 0
  %725 = vmatpush1.bf16.msra.mxu0 0
  %726 = vmatprep.subr.bf16.mxu0 0
  %727 = vmatpush1.bf16.msra.mxu0 0
  %728 = vmatprep.subr.bf16.mxu0 0
  %729 = vmatpush1.bf16.msra.mxu0 0
  %730 = vmatprep.subr.bf16.mxu0 0
  %731 = vmatpush1.bf16.msra.mxu0 0
  %732 = vmatprep.subr.bf16.mxu0 0
  %733 = vmatpush1.bf16.msra.mxu0 0
  %734 = vmatprep.mubr.bf16.mxu0 0
  %735 = vmatmul.mubr.bf16.gmra.mrb[0].mxu0 %v337
  %v736 = vpop.f32.mrb[0].mxu0
  %v737 = vadd.f32 %v239, %v736
  %v738 = vpop.f32.mrb[0].mxu0
  %v739 = vadd.f32 %v241, %v738
  %v740 = vpop.f32.mrb[0].mxu0
  %v741 = vadd.f32 %v243, %v740
  %v742 = vpop.f32.mrb[0].mxu0
  %v743 = vadd.f32 %v245, %v742
  %744 = vdwg.mxu0
  %745 = vmatprep.subr.bf16.mxu0 %v536
  %746 = vmatpush1.bf16.msra.mxu0 %v535
  %747 = vmatprep.subr.bf16.mxu0 %v544
  %748 = vmatpush1.bf16.msra.mxu0 %v543
  %749 = vmatprep.subr.bf16.mxu0 %v552
  %750 = vmatpush1.bf16.msra.mxu0 %v551
  %751 = vmatprep.subr.bf16.mxu0 %v560
  %752 = vmatpush1.bf16.msra.mxu0 %v559
  %753 = vmatprep.subr.bf16.mxu0 %v568
  %754 = vmatpush1.bf16.msra.mxu0 %v567
  %755 = vmatprep.subr.bf16.mxu0 %v576
  %756 = vmatpush1.bf16.msra.mxu0 %v575
  %757 = vmatprep.subr.bf16.mxu0 %v584
  %758 = vmatpush1.bf16.msra.mxu0 %v583
  %759 = vmatprep.subr.bf16.mxu0 %v592
  %760 = vmatpush1.bf16.msra.mxu0 %v591
  %761 = vmatprep.subr.bf16.mxu0 0
  %762 = vmatpush1.bf16.msra.mxu0 0
  %763 = vmatprep.subr.bf16.mxu0 0
  %764 = vmatpush1.bf16.msra.mxu0 0
  %765 = vmatprep.subr.bf16.mxu0 0
  %766 = vmatpush1.bf16.msra.mxu0 0
  %767 = vmatprep.subr.bf16.mxu0 0
  %768 = vmatpush1.bf16.msra.mxu0 0
  %769 = vmatprep.subr.bf16.mxu0 0
  %770 = vmatpush1.bf16.msra.mxu0 0
  %771 = vmatprep.subr.bf16.mxu0 0
  %772 = vmatpush1.bf16.msra.mxu0 0
  %773 = vmatprep.subr.bf16.mxu0 0
  %774 = vmatpush1.bf16.msra.mxu0 0
  %775 = vmatprep.subr.bf16.mxu0 0
  %776 = vmatpush1.bf16.msra.mxu0 0
  %777 = vmatprep.mubr.bf16.mxu0 0
  %778 = vmatmul.mubr.bf16.gmra.mrb[0].mxu0 %v337
  %v779 = vpop.f32.mrb[0].mxu0
  %v780 = vadd.f32 %v282, %v779
  %v781 = vpop.f32.mrb[0].mxu0
  %v782 = vadd.f32 %v284, %v781
  %v783 = vpop.f32.mrb[0].mxu0
  %v784 = vadd.f32 %v286, %v783
  %v785 = vpop.f32.mrb[0].mxu0
  %v786 = vadd.f32 %v288, %v785
  %787 = vdwg.mxu0
  %788 = vmatprep.subr.bf16.mxu0 %v538
  %789 = vmatpush1.bf16.msra.mxu0 %v537
  %790 = vmatprep.subr.bf16.mxu0 %v546
  %791 = vmatpush1.bf16.msra.mxu0 %v545
  %792 = vmatprep.subr.bf16.mxu0 %v554
  %793 = vmatpush1.bf16.msra.mxu0 %v553
  %794 = vmatprep.subr.bf16.mxu0 %v562
  %795 = vmatpush1.bf16.msra.mxu0 %v561
  %796 = vmatprep.subr.bf16.mxu0 %v570
  %797 = vmatpush1.bf16.msra.mxu0 %v569
  %798 = vmatprep.subr.bf16.mxu0 %v578
  %799 = vmatpush1.bf16.msra.mxu0 %v577
  %800 = vmatprep.subr.bf16.mxu0 %v586
  %801 = vmatpush1.bf16.msra.mxu0 %v585
  %802 = vmatprep.subr.bf16.mxu0 %v594
  %803 = vmatpush1.bf16.msra.mxu0 %v593
  %804 = vmatprep.subr.bf16.mxu0 0
  %805 = vmatpush1.bf16.msra.mxu0 0
  %806 = vmatprep.subr.bf16.mxu0 0
  %807 = vmatpush1.bf16.msra.mxu0 0
  %808 = vmatprep.subr.bf16.mxu0 0
  %809 = vmatpush1.bf16.msra.mxu0 0
  %810 = vmatprep.subr.bf16.mxu0 0
  %811 = vmatpush1.bf16.msra.mxu0 0
  %812 = vmatprep.subr.bf16.mxu0 0
  %813 = vmatpush1.bf16.msra.mxu0 0
  %814 = vmatprep.subr.bf16.mxu0 0
  %815 = vmatpush1.bf16.msra.mxu0 0
  %816 = vmatprep.subr.bf16.mxu0 0
  %817 = vmatpush1.bf16.msra.mxu0 0
  %818 = vmatprep.subr.bf16.mxu0 0
  %819 = vmatpush1.bf16.msra.mxu0 0
  %820 = vmatprep.mubr.bf16.mxu0 0
  %821 = vmatmul.mubr.bf16.gmra.mrb[0].mxu0 %v337
  %v822 = vpop.f32.mrb[0].mxu0
  %v823 = vadd.f32 %v325, %v822
  %v824 = vpop.f32.mrb[0].mxu0
  %v825 = vadd.f32 %v327, %v824
  %v826 = vpop.f32.mrb[0].mxu0
  %v827 = vadd.f32 %v329, %v826
  %v828 = vpop.f32.mrb[0].mxu0
  %v829 = vadd.f32 %v331, %v828
  %830 = vdwg.mxu0
  %v831 = vmul.f32 %v694, 0.2
  %v832 = vmul.f32 %v696, 0.2
  %v833 = vmul.f32 %v737, 0.2
  %v834 = vmul.f32 %v739, 0.2
  %v835 = vmul.f32 %v780, 0.2
  %v836 = vmul.f32 %v782, 0.2
  %v837 = vmul.f32 %v823, 0.2
  %v838 = vmul.f32 %v825, 0.2
  %v839 = vmul.f32 %v698, 0.2
  %v840 = vmul.f32 %v700, 0.2
  %v841 = vmul.f32 %v741, 0.2
  %v842 = vmul.f32 %v743, 0.2
  %v843 = vmul.f32 %v784, 0.2
  %v844 = vmul.f32 %v786, 0.2
  %v845 = vmul.f32 %v827, 0.2
  %v846 = vmul.f32 %v829, 0.2
  %v847 = vmax.f32 %v694, %v831
  %v848 = vmax.f32 %v696, %v832
  %v849 = vmax.f32 %v737, %v833
  %v850 = vmax.f32 %v739, %v834
  %v851 = vmax.f32 %v780, %v835
  %v852 = vmax.f32 %v782, %v836
  %v853 = vmax.f32 %v823, %v837
  %v854 = vmax.f32 %v825, %v838
  %v855 = vmax.f32 %v698, %v839
  %v856 = vmax.f32 %v700, %v840
  %v857 = vmax.f32 %v741, %v841
  %v858 = vmax.f32 %v743, %v842
  %v859 = vmax.f32 %v784, %v843
  %v860 = vmax.f32 %v786, %v844
  %v861 = vmax.f32 %v827, %v845
  %v862 = vmax.f32 %v829, %v846
  %v863 = vpack.c.bf16 %v855, %v847
  %v864 = vpack.c.bf16 %v856, %v848
  %v865 = vpack.c.bf16 %v857, %v849
  %v866 = vpack.c.bf16 %v858, %v850
  %v867 = vpack.c.bf16 %v859, %v851
  %v868 = vpack.c.bf16 %v860, %v852
  %v869 = vpack.c.bf16 %v861, %v853
  %v870 = vpack.c.bf16 %v862, %v854
  %v871 = vld [vmem:[%s4] sm:$0xff]
  %v872 = vld [vmem:[%s4 + $0x8] sm:$0xff]
  %v873 = vld [vmem:[%s4 + $0x10] sm:$0xff]
  %v874 = vld [vmem:[%s4 + $0x18] sm:$0xff]
  %v875 = vld [vmem:[%s4 + $0x20] sm:$0xff]
  %v876 = vld [vmem:[%s4 + $0x28] sm:$0xff]
  %v877 = vld [vmem:[%s4 + $0x30] sm:$0xff]
  %v878 = vld [vmem:[%s4 + $0x38] sm:$0xff]
  %v879 = vld [vmem:[%s4 + $0x40] sm:$0xff]
  %v880 = vld [vmem:[%s4 + $0x48] sm:$0xff]
  %v881 = vld [vmem:[%s4 + $0x50] sm:$0xff]
  %v882 = vld [vmem:[%s4 + $0x58] sm:$0xff]
  %v883 = vld [vmem:[%s4 + $0x60] sm:$0xff]
  %v884 = vld [vmem:[%s4 + $0x68] sm:$0xff]
  %v885 = vld [vmem:[%s4 + $0x70] sm:$0xff]
  %v886 = vld [vmem:[%s4 + $0x78] sm:$0xff]
  %v887 = vld [vmem:[%s4 + $0x80] sm:$0xff]
  %v888 = vld [vmem:[%s4 + $0x88] sm:$0xff]
  %v889 = vld [vmem:[%s4 + $0x90] sm:$0xff]
  %v890 = vld [vmem:[%s4 + $0x98] sm:$0xff]
  %v891 = vld [vmem:[%s4 + $0xa0] sm:$0xff]
  %v892 = vld [vmem:[%s4 + $0xa8] sm:$0xff]
  %v893 = vld [vmem:[%s4 + $0xb0] sm:$0xff]
  %v894 = vld [vmem:[%s4 + $0xb8] sm:$0xff]
  %v895 = vld [vmem:[%s4 + $0xc0] sm:$0xff]
  %v896 = vld [vmem:[%s4 + $0xc8] sm:$0xff]
  %v897 = vld [vmem:[%s4 + $0xd0] sm:$0xff]
  %v898 = vld [vmem:[%s4 + $0xd8] sm:$0xff]
  %v899 = vld [vmem:[%s4 + $0xe0] sm:$0xff]
  %v900 = vld [vmem:[%s4 + $0xe8] sm:$0xff]
  %v901 = vld [vmem:[%s4 + $0xf0] sm:$0xff]
  %v902 = vld [vmem:[%s4 + $0xf8] sm:$0xff]
  %v903 = vld [vmem:[%s4 + $0x100] sm:$0xff]
  %v904 = vld [vmem:[%s4 + $0x108] sm:$0xff]
  %v905 = vld [vmem:[%s4 + $0x110] sm:$0xff]
  %v906 = vld [vmem:[%s4 + $0x118] sm:$0xff]
  %v907 = vld [vmem:[%s4 + $0x120] sm:$0xff]
  %v908 = vld [vmem:[%s4 + $0x128] sm:$0xff]
  %v909 = vld [vmem:[%s4 + $0x130] sm:$0xff]
  %v910 = vld [vmem:[%s4 + $0x138] sm:$0xff]
  %v911 = vld [vmem:[%s4 + $0x140] sm:$0xff]
  %v912 = vld [vmem:[%s4 + $0x148] sm:$0xff]
  %v913 = vld [vmem:[%s4 + $0x150] sm:$0xff]
  %v914 = vld [vmem:[%s4 + $0x158] sm:$0xff]
  %v915 = vld [vmem:[%s4 + $0x160] sm:$0xff]
  %v916 = vld [vmem:[%s4 + $0x168] sm:$0xff]
  %v917 = vld [vmem:[%s4 + $0x170] sm:$0xff]
  %v918 = vld [vmem:[%s4 + $0x178] sm:$0xff]
  %v919 = vld [vmem:[%s4 + $0x180] sm:$0xff]
  %v920 = vld [vmem:[%s4 + $0x188] sm:$0xff]
  %v921 = vld [vmem:[%s4 + $0x190] sm:$0xff]
  %v922 = vld [vmem:[%s4 + $0x198] sm:$0xff]
  %v923 = vld [vmem:[%s4 + $0x1a0] sm:$0xff]
  %v924 = vld [vmem:[%s4 + $0x1a8] sm:$0xff]
  %v925 = vld [vmem:[%s4 + $0x1b0] sm:$0xff]
  %v926 = vld [vmem:[%s4 + $0x1b8] sm:$0xff]
  %v927 = vld [vmem:[%s4 + $0x1c0] sm:$0xff]
  %v928 = vld [vmem:[%s4 + $0x1c8] sm:$0xff]
  %v929 = vld [vmem:[%s4 + $0x1d0] sm:$0xff]
  %v930 = vld [vmem:[%s4 + $0x1d8] sm:$0xff]
  %v931 = vld [vmem:[%s4 + $0x1e0] sm:$0xff]
  %v932 = vld [vmem:[%s4 + $0x1e8] sm:$0xff]
  %v933 = vld [vmem:[%s4 + $0x1f0] sm:$0xff]
  %v934 = vld [vmem:[%s4 + $0x1f8] sm:$0xff]
  %v935 = vld [vmem:[%s4 + $0x200] sm:$0xff]
  %v936 = vld [vmem:[%s4 + $0x208] sm:$0xff]
  %v937 = vld [vmem:[%s4 + $0x210] sm:$0xff]
  %v938 = vld [vmem:[%s4 + $0x218] sm:$0xff]
  %v939 = vld [vmem:[%s4 + $0x220] sm:$0xff]
  %v940 = vld [vmem:[%s4 + $0x228] sm:$0xff]
  %v941 = vld [vmem:[%s4 + $0x230] sm:$0xff]
  %v942 = vld [vmem:[%s4 + $0x238] sm:$0xff]
  %v943 = vld [vmem:[%s4 + $0x240] sm:$0xff]
  %v944 = vld [vmem:[%s4 + $0x248] sm:$0xff]
  %v945 = vld [vmem:[%s4 + $0x250] sm:$0xff]
  %v946 = vld [vmem:[%s4 + $0x258] sm:$0xff]
  %v947 = vld [vmem:[%s4 + $0x260] sm:$0xff]
  %v948 = vld [vmem:[%s4 + $0x268] sm:$0xff]
  %v949 = vld [vmem:[%s4 + $0x270] sm:$0xff]
  %v950 = vld [vmem:[%s4 + $0x278] sm:$0xff]
  %v951 = vld [vmem:[%s4 + $0x280] sm:$0xff]
  %v952 = vld [vmem:[%s4 + $0x288] sm:$0xff]
  %v953 = vld [vmem:[%s4 + $0x290] sm:$0xff]
  %v954 = vld [vmem:[%s4 + $0x298] sm:$0xff]
  %v955 = vld [vmem:[%s4 + $0x2a0] sm:$0xff]
  %v956 = vld [vmem:[%s4 + $0x2a8] sm:$0xff]
  %v957 = vld [vmem:[%s4 + $0x2b0] sm:$0xff]
  %v958 = vld [vmem:[%s4 + $0x2b8] sm:$0xff]
  %v959 = vld [vmem:[%s4 + $0x2c0] sm:$0xff]
  %v960 = vld [vmem:[%s4 + $0x2c8] sm:$0xff]
  %v961 = vld [vmem:[%s4 + $0x2d0] sm:$0xff]
  %v962 = vld [vmem:[%s4 + $0x2d8] sm:$0xff]
  %v963 = vld [vmem:[%s4 + $0x2e0] sm:$0xff]
  %v964 = vld [vmem:[%s4 + $0x2e8] sm:$0xff]
  %v965 = vld [vmem:[%s4 + $0x2f0] sm:$0xff]
  %v966 = vld [vmem:[%s4 + $0x2f8] sm:$0xff]
  %v967 = vld [vmem:[%s4 + $0x300] sm:$0xff]
  %v968 = vld [vmem:[%s4 + $0x308] sm:$0xff]
  %v969 = vld [vmem:[%s4 + $0x310] sm:$0xff]
  %v970 = vld [vmem:[%s4 + $0x318] sm:$0xff]
  %v971 = vld [vmem:[%s4 + $0x320] sm:$0xff]
  %v972 = vld [vmem:[%s4 + $0x328] sm:$0xff]
  %v973 = vld [vmem:[%s4 + $0x330] sm:$0xff]
  %v974 = vld [vmem:[%s4 + $0x338] sm:$0xff]
  %v975 = vld [vmem:[%s4 + $0x340] sm:$0xff]
  %v976 = vld [vmem:[%s4 + $0x348] sm:$0xff]
  %v977 = vld [vmem:[%s4 + $0x350] sm:$0xff]
  %v978 = vld [vmem:[%s4 + $0x358] sm:$0xff]
  %v979 = vld [vmem:[%s4 + $0x360] sm:$0xff]
  %v980 = vld [vmem:[%s4 + $0x368] sm:$0xff]
  %v981 = vld [vmem:[%s4 + $0x370] sm:$0xff]
  %v982 = vld [vmem:[%s4 + $0x378] sm:$0xff]
  %v983 = vld [vmem:[%s4 + $0x380] sm:$0xff]
  %v984 = vld [vmem:[%s4 + $0x388] sm:$0xff]
  %v985 = vld [vmem:[%s4 + $0x390] sm:$0xff]
  %v986 = vld [vmem:[%s4 + $0x398] sm:$0xff]
  %v987 = vld [vmem:[%s4 + $0x3a0] sm:$0xff]
  %v988 = vld [vmem:[%s4 + $0x3a8] sm:$0xff]
  %v989 = vld [vmem:[%s4 + $0x3b0] sm:$0xff]
  %v990 = vld [vmem:[%s4 + $0x3b8] sm:$0xff]
  %v991 = vld [vmem:[%s4 + $0x3c0] sm:$0xff]
  %v992 = vld [vmem:[%s4 + $0x3c8] sm:$0xff]
  %v993 = vld [vmem:[%s4 + $0x3d0] sm:$0xff]
  %v994 = vld [vmem:[%s4 + $0x3d8] sm:$0xff]
  %v995 = vld [vmem:[%s4 + $0x3e0] sm:$0xff]
  %v996 = vld [vmem:[%s4 + $0x3e8] sm:$0xff]
  %v997 = vld [vmem:[%s4 + $0x3f0] sm:$0xff]
  %v998 = vld [vmem:[%s4 + $0x3f8] sm:$0xff]
  %v999 = vld [vmem:[%s4 + $0x400] sm:$0xff]
  %v1000 = vld [vmem:[%s4 + $0x408] sm:$0xff]
  %v1001 = vld [vmem:[%s4 + $0x410] sm:$0xff]
  %v1002 = vld [vmem:[%s4 + $0x418] sm:$0xff]
  %v1003 = vld [vmem:[%s4 + $0x420] sm:$0xff]
  %v1004 = vld [vmem:[%s4 + $0x428] sm:$0xff]
  %v1005 = vld [vmem:[%s4 + $0x430] sm:$0xff]
  %v1006 = vld [vmem:[%s4 + $0x438] sm:$0xff]
  %v1007 = vld [vmem:[%s4 + $0x440] sm:$0xff]
  %v1008 = vld [vmem:[%s4 + $0x448] sm:$0xff]
  %v1009 = vld [vmem:[%s4 + $0x450] sm:$0xff]
  %v1010 = vld [vmem:[%s4 + $0x458] sm:$0xff]
  %v1011 = vld [vmem:[%s4 + $0x460] sm:$0xff]
  %v1012 = vld [vmem:[%s4 + $0x468] sm:$0xff]
  %v1013 = vld [vmem:[%s4 + $0x470] sm:$0xff]
  %v1014 = vld [vmem:[%s4 + $0x478] sm:$0xff]
  %v1015 = vld [vmem:[%s4 + $0x480] sm:$0xff]
  %v1016 = vld [vmem:[%s4 + $0x488] sm:$0xff]
  %v1017 = vld [vmem:[%s4 + $0x490] sm:$0xff]
  %v1018 = vld [vmem:[%s4 + $0x498] sm:$0xff]
  %v1019 = vld [vmem:[%s4 + $0x4a0] sm:$0xff]
  %v1020 = vld [vmem:[%s4 + $0x4a8] sm:$0xff]
  %v1021 = vld [vmem:[%s4 + $0x4b0] sm:$0xff]
  %v1022 = vld [vmem:[%s4 + $0x4b8] sm:$0xff]
  %v1023 = vld [vmem:[%s4 + $0x4c0] sm:$0xff]
  %v1024 = vld [vmem:[%s4 + $0x4c8] sm:$0xff]
  %v1025 = vld [vmem:[%s4 + $0x4d0] sm:$0xff]
  %v1026 = vld [vmem:[%s4 + $0x4d8] sm:$0xff]
  %v1027 = vld [vmem:[%s4 + $0x4e0] sm:$0xff]
  %v1028 = vld [vmem:[%s4 + $0x4e8] sm:$0xff]
  %v1029 = vld [vmem:[%s4 + $0x4f0] sm:$0xff]
  %v1030 = vld [vmem:[%s4 + $0x4f8] sm:$0xff]
  %v1031 = vld [vmem:[%s4 + $0x500] sm:$0xff]
  %v1032 = vld [vmem:[%s4 + $0x508] sm:$0xff]
  %v1033 = vld [vmem:[%s4 + $0x510] sm:$0xff]
  %v1034 = vld [vmem:[%s4 + $0x518] sm:$0xff]
  %v1035 = vld [vmem:[%s4 + $0x520] sm:$0xff]
  %v1036 = vld [vmem:[%s4 + $0x528] sm:$0xff]
  %v1037 = vld [vmem:[%s4 + $0x530] sm:$0xff]
  %v1038 = vld [vmem:[%s4 + $0x538] sm:$0xff]
  %v1039 = vld [vmem:[%s4 + $0x540] sm:$0xff]
  %v1040 = vld [vmem:[%s4 + $0x548] sm:$0xff]
  %v1041 = vld [vmem:[%s4 + $0x550] sm:$0xff]
  %v1042 = vld [vmem:[%s4 + $0x558] sm:$0xff]
  %v1043 = vld [vmem:[%s4 + $0x560] sm:$0xff]
  %v1044 = vld [vmem:[%s4 + $0x568] sm:$0xff]
  %v1045 = vld [vmem:[%s4 + $0x570] sm:$0xff]
  %v1046 = vld [vmem:[%s4 + $0x578] sm:$0xff]
  %v1047 = vld [vmem:[%s4 + $0x580] sm:$0xff]
  %v1048 = vld [vmem:[%s4 + $0x588] sm:$0xff]
  %v1049 = vld [vmem:[%s4 + $0x590] sm:$0xff]
  %v1050 = vld [vmem:[%s4 + $0x598] sm:$0xff]
  %v1051 = vld [vmem:[%s4 + $0x5a0] sm:$0xff]
  %v1052 = vld [vmem:[%s4 + $0x5a8] sm:$0xff]
  %v1053 = vld [vmem:[%s4 + $0x5b0] sm:$0xff]
  %v1054 = vld [vmem:[%s4 + $0x5b8] sm:$0xff]
  %v1055 = vld [vmem:[%s4 + $0x5c0] sm:$0xff]
  %v1056 = vld [vmem:[%s4 + $0x5c8] sm:$0xff]
  %v1057 = vld [vmem:[%s4 + $0x5d0] sm:$0xff]
  %v1058 = vld [vmem:[%s4 + $0x5d8] sm:$0xff]
  %v1059 = vld [vmem:[%s4 + $0x5e0] sm:$0xff]
  %v1060 = vld [vmem:[%s4 + $0x5e8] sm:$0xff]
  %v1061 = vld [vmem:[%s4 + $0x5f0] sm:$0xff]
  %v1062 = vld [vmem:[%s4 + $0x5f8] sm:$0xff]
  %v1063 = vld [vmem:[%s4 + $0x600] sm:$0xff]
  %v1064 = vld [vmem:[%s4 + $0x608] sm:$0xff]
  %v1065 = vld [vmem:[%s4 + $0x610] sm:$0xff]
  %v1066 = vld [vmem:[%s4 + $0x618] sm:$0xff]
  %v1067 = vld [vmem:[%s4 + $0x620] sm:$0xff]
  %v1068 = vld [vmem:[%s4 + $0x628] sm:$0xff]
  %v1069 = vld [vmem:[%s4 + $0x630] sm:$0xff]
  %v1070 = vld [vmem:[%s4 + $0x638] sm:$0xff]
  %v1071 = vld [vmem:[%s4 + $0x640] sm:$0xff]
  %v1072 = vld [vmem:[%s4 + $0x648] sm:$0xff]
  %v1073 = vld [vmem:[%s4 + $0x650] sm:$0xff]
  %v1074 = vld [vmem:[%s4 + $0x658] sm:$0xff]
  %v1075 = vld [vmem:[%s4 + $0x660] sm:$0xff]
  %v1076 = vld [vmem:[%s4 + $0x668] sm:$0xff]
  %v1077 = vld [vmem:[%s4 + $0x670] sm:$0xff]
  %v1078 = vld [vmem:[%s4 + $0x678] sm:$0xff]
  %v1079 = vld [vmem:[%s4 + $0x680] sm:$0xff]
  %v1080 = vld [vmem:[%s4 + $0x688] sm:$0xff]
  %v1081 = vld [vmem:[%s4 + $0x690] sm:$0xff]
  %v1082 = vld [vmem:[%s4 + $0x698] sm:$0xff]
  %v1083 = vld [vmem:[%s4 + $0x6a0] sm:$0xff]
  %v1084 = vld [vmem:[%s4 + $0x6a8] sm:$0xff]
  %v1085 = vld [vmem:[%s4 + $0x6b0] sm:$0xff]
  %v1086 = vld [vmem:[%s4 + $0x6b8] sm:$0xff]
  %v1087 = vld [vmem:[%s4 + $0x6c0] sm:$0xff]
  %v1088 = vld [vmem:[%s4 + $0x6c8] sm:$0xff]
  %v1089 = vld [vmem:[%s4 + $0x6d0] sm:$0xff]
  %v1090 = vld [vmem:[%s4 + $0x6d8] sm:$0xff]
  %v1091 = vld [vmem:[%s4 + $0x6e0] sm:$0xff]
  %v1092 = vld [vmem:[%s4 + $0x6e8] sm:$0xff]
  %v1093 = vld [vmem:[%s4 + $0x6f0] sm:$0xff]
  %v1094 = vld [vmem:[%s4 + $0x6f8] sm:$0xff]
  %v1095 = vld [vmem:[%s4 + $0x700] sm:$0xff]
  %v1096 = vld [vmem:[%s4 + $0x708] sm:$0xff]
  %v1097 = vld [vmem:[%s4 + $0x710] sm:$0xff]
  %v1098 = vld [vmem:[%s4 + $0x718] sm:$0xff]
  %v1099 = vld [vmem:[%s4 + $0x720] sm:$0xff]
  %v1100 = vld [vmem:[%s4 + $0x728] sm:$0xff]
  %v1101 = vld [vmem:[%s4 + $0x730] sm:$0xff]
  %v1102 = vld [vmem:[%s4 + $0x738] sm:$0xff]
  %v1103 = vld [vmem:[%s4 + $0x740] sm:$0xff]
  %v1104 = vld [vmem:[%s4 + $0x748] sm:$0xff]
  %v1105 = vld [vmem:[%s4 + $0x750] sm:$0xff]
  %v1106 = vld [vmem:[%s4 + $0x758] sm:$0xff]
  %v1107 = vld [vmem:[%s4 + $0x760] sm:$0xff]
  %v1108 = vld [vmem:[%s4 + $0x768] sm:$0xff]
  %v1109 = vld [vmem:[%s4 + $0x770] sm:$0xff]
  %v1110 = vld [vmem:[%s4 + $0x778] sm:$0xff]
  %v1111 = vld [vmem:[%s4 + $0x780] sm:$0xff]
  %v1112 = vld [vmem:[%s4 + $0x788] sm:$0xff]
  %v1113 = vld [vmem:[%s4 + $0x790] sm:$0xff]
  %v1114 = vld [vmem:[%s4 + $0x798] sm:$0xff]
  %v1115 = vld [vmem:[%s4 + $0x7a0] sm:$0xff]
  %v1116 = vld [vmem:[%s4 + $0x7a8] sm:$0xff]
  %v1117 = vld [vmem:[%s4 + $0x7b0] sm:$0xff]
  %v1118 = vld [vmem:[%s4 + $0x7b8] sm:$0xff]
  %v1119 = vld [vmem:[%s4 + $0x7c0] sm:$0xff]
  %v1120 = vld [vmem:[%s4 + $0x7c8] sm:$0xff]
  %v1121 = vld [vmem:[%s4 + $0x7d0] sm:$0xff]
  %v1122 = vld [vmem:[%s4 + $0x7d8] sm:$0xff]
  %v1123 = vld [vmem:[%s4 + $0x7e0] sm:$0xff]
  %v1124 = vld [vmem:[%s4 + $0x7e8] sm:$0xff]
  %v1125 = vld [vmem:[%s4 + $0x7f0] sm:$0xff]
  %v1126 = vld [vmem:[%s4 + $0x7f8] sm:$0xff]
  %v1127 = vld [vmem:[%s5] sm:$0xf]
  %v1129 = vlaneseq
  %v1130 = vshrl.u32 %v1129, 7
  %v1131 = vsub.s32 0, %v1130
  %v1132 = vrot.slane %v1127, %v1131
  %v1133 = vlaneseq
  %v1134 = vshrl.u32 %v1133, 7
  %v1135 = vsub.s32 1, %v1134
  %v1136 = vrot.slane %v1127, %v1135
  %v1137 = vlaneseq
  %v1138 = vshrl.u32 %v1137, 7
  %v1139 = vsub.s32 2, %v1138
  %v1140 = vrot.slane %v1127, %v1139
  %v1141 = vlaneseq
  %v1142 = vshrl.u32 %v1141, 7
  %v1143 = vsub.s32 3, %v1142
  %v1144 = vrot.slane %v1127, %v1143
  %v1405 = vunpack.c.l.b16 %v871
  %v1406 = vunpack.c.h.b16 %v871
  %v1407 = vunpack.c.l.b16 %v872
  %v1408 = vunpack.c.h.b16 %v872
  %v1409 = vunpack.c.l.b16 %v873
  %v1410 = vunpack.c.h.b16 %v873
  %v1411 = vunpack.c.l.b16 %v874
  %v1412 = vunpack.c.h.b16 %v874
  %v1413 = vunpack.c.l.b16 %v875
  %v1414 = vunpack.c.h.b16 %v875
  %v1415 = vunpack.c.l.b16 %v876
  %v1416 = vunpack.c.h.b16 %v876
  %v1417 = vunpack.c.l.b16 %v877
  %v1418 = vunpack.c.h.b16 %v877
  %v1419 = vunpack.c.l.b16 %v878
  %v1420 = vunpack.c.h.b16 %v878
  %v1421 = vunpack.c.l.b16 %v879
  %v1422 = vunpack.c.h.b16 %v879
  %v1423 = vunpack.c.l.b16 %v880
  %v1424 = vunpack.c.h.b16 %v880
  %v1425 = vunpack.c.l.b16 %v881
  %v1426 = vunpack.c.h.b16 %v881
  %v1427 = vunpack.c.l.b16 %v882
  %v1428 = vunpack.c.h.b16 %v882
  %v1429 = vunpack.c.l.b16 %v883
  %v1430 = vunpack.c.h.b16 %v883
  %v1431 = vunpack.c.l.b16 %v884
  %v1432 = vunpack.c.h.b16 %v884
  %v1433 = vunpack.c.l.b16 %v885
  %v1434 = vunpack.c.h.b16 %v885
  %v1435 = vunpack.c.l.b16 %v886
  %v1436 = vunpack.c.h.b16 %v886
  %v1437 = vunpack.c.l.b16 %v887
  %v1438 = vunpack.c.h.b16 %v887
  %v1439 = vunpack.c.l.b16 %v888
  %v1440 = vunpack.c.h.b16 %v888
  %v1441 = vunpack.c.l.b16 %v889
  %v1442 = vunpack.c.h.b16 %v889
  %v1443 = vunpack.c.l.b16 %v890
  %v1444 = vunpack.c.h.b16 %v890
  %v1445 = vunpack.c.l.b16 %v891
  %v1446 = vunpack.c.h.b16 %v891
  %v1447 = vunpack.c.l.b16 %v892
  %v1448 = vunpack.c.h.b16 %v892
  %v1449 = vunpack.c.l.b16 %v893
  %v1450 = vunpack.c.h.b16 %v893
  %v1451 = vunpack.c.l.b16 %v894
  %v1452 = vunpack.c.h.b16 %v894
  %v1453 = vunpack.c.l.b16 %v895
  %v1454 = vunpack.c.h.b16 %v895
  %v1455 = vunpack.c.l.b16 %v896
  %v1456 = vunpack.c.h.b16 %v896
  %v1457 = vunpack.c.l.b16 %v897
  %v1458 = vunpack.c.h.b16 %v897
  %v1459 = vunpack.c.l.b16 %v898
  %v1460 = vunpack.c.h.b16 %v898
  %v1461 = vunpack.c.l.b16 %v899
  %v1462 = vunpack.c.h.b16 %v899
  %v1463 = vunpack.c.l.b16 %v900
  %v1464 = vunpack.c.h.b16 %v900
  %v1465 = vunpack.c.l.b16 %v901
  %v1466 = vunpack.c.h.b16 %v901
  %v1467 = vunpack.c.l.b16 %v902
  %v1468 = vunpack.c.h.b16 %v902
  %v1469 = vunpack.c.l.b16 %v903
  %v1470 = vunpack.c.h.b16 %v903
  %v1471 = vunpack.c.l.b16 %v904
  %v1472 = vunpack.c.h.b16 %v904
  %v1473 = vunpack.c.l.b16 %v905
  %v1474 = vunpack.c.h.b16 %v905
  %v1475 = vunpack.c.l.b16 %v906
  %v1476 = vunpack.c.h.b16 %v906
  %v1477 = vunpack.c.l.b16 %v907
  %v1478 = vunpack.c.h.b16 %v907
  %v1479 = vunpack.c.l.b16 %v908
  %v1480 = vunpack.c.h.b16 %v908
  %v1481 = vunpack.c.l.b16 %v909
  %v1482 = vunpack.c.h.b16 %v909
  %v1483 = vunpack.c.l.b16 %v910
  %v1484 = vunpack.c.h.b16 %v910
  %v1485 = vunpack.c.l.b16 %v911
  %v1486 = vunpack.c.h.b16 %v911
  %v1487 = vunpack.c.l.b16 %v912
  %v1488 = vunpack.c.h.b16 %v912
  %v1489 = vunpack.c.l.b16 %v913
  %v1490 = vunpack.c.h.b16 %v913
  %v1491 = vunpack.c.l.b16 %v914
  %v1492 = vunpack.c.h.b16 %v914
  %v1493 = vunpack.c.l.b16 %v915
  %v1494 = vunpack.c.h.b16 %v915
  %v1495 = vunpack.c.l.b16 %v916
  %v1496 = vunpack.c.h.b16 %v916
  %v1497 = vunpack.c.l.b16 %v917
  %v1498 = vunpack.c.h.b16 %v917
  %v1499 = vunpack.c.l.b16 %v918
  %v1500 = vunpack.c.h.b16 %v918
  %v1501 = vunpack.c.l.b16 %v919
  %v1502 = vunpack.c.h.b16 %v919
  %v1503 = vunpack.c.l.b16 %v920
  %v1504 = vunpack.c.h.b16 %v920
  %v1505 = vunpack.c.l.b16 %v921
  %v1506 = vunpack.c.h.b16 %v921
  %v1507 = vunpack.c.l.b16 %v922
  %v1508 = vunpack.c.h.b16 %v922
  %v1509 = vunpack.c.l.b16 %v923
  %v1510 = vunpack.c.h.b16 %v923
  %v1511 = vunpack.c.l.b16 %v924
  %v1512 = vunpack.c.h.b16 %v924
  %v1513 = vunpack.c.l.b16 %v925
  %v1514 = vunpack.c.h.b16 %v925
  %v1515 = vunpack.c.l.b16 %v926
  %v1516 = vunpack.c.h.b16 %v926
  %v1517 = vunpack.c.l.b16 %v927
  %v1518 = vunpack.c.h.b16 %v927
  %v1519 = vunpack.c.l.b16 %v928
  %v1520 = vunpack.c.h.b16 %v928
  %v1521 = vunpack.c.l.b16 %v929
  %v1522 = vunpack.c.h.b16 %v929
  %v1523 = vunpack.c.l.b16 %v930
  %v1524 = vunpack.c.h.b16 %v930
  %v1525 = vunpack.c.l.b16 %v931
  %v1526 = vunpack.c.h.b16 %v931
  %v1527 = vunpack.c.l.b16 %v932
  %v1528 = vunpack.c.h.b16 %v932
  %v1529 = vunpack.c.l.b16 %v933
  %v1530 = vunpack.c.h.b16 %v933
  %v1531 = vunpack.c.l.b16 %v934
  %v1532 = vunpack.c.h.b16 %v934
  %v1533 = vunpack.c.l.b16 %v935
  %v1534 = vunpack.c.h.b16 %v935
  %v1535 = vunpack.c.l.b16 %v936
  %v1536 = vunpack.c.h.b16 %v936
  %v1537 = vunpack.c.l.b16 %v937
  %v1538 = vunpack.c.h.b16 %v937
  %v1539 = vunpack.c.l.b16 %v938
  %v1540 = vunpack.c.h.b16 %v938
  %v1541 = vunpack.c.l.b16 %v939
  %v1542 = vunpack.c.h.b16 %v939
  %v1543 = vunpack.c.l.b16 %v940
  %v1544 = vunpack.c.h.b16 %v940
  %v1545 = vunpack.c.l.b16 %v941
  %v1546 = vunpack.c.h.b16 %v941
  %v1547 = vunpack.c.l.b16 %v942
  %v1548 = vunpack.c.h.b16 %v942
  %v1549 = vunpack.c.l.b16 %v943
  %v1550 = vunpack.c.h.b16 %v943
  %v1551 = vunpack.c.l.b16 %v944
  %v1552 = vunpack.c.h.b16 %v944
  %v1553 = vunpack.c.l.b16 %v945
  %v1554 = vunpack.c.h.b16 %v945
  %v1555 = vunpack.c.l.b16 %v946
  %v1556 = vunpack.c.h.b16 %v946
  %v1557 = vunpack.c.l.b16 %v947
  %v1558 = vunpack.c.h.b16 %v947
  %v1559 = vunpack.c.l.b16 %v948
  %v1560 = vunpack.c.h.b16 %v948
  %v1561 = vunpack.c.l.b16 %v949
  %v1562 = vunpack.c.h.b16 %v949
  %v1563 = vunpack.c.l.b16 %v950
  %v1564 = vunpack.c.h.b16 %v950
  %v1565 = vunpack.c.l.b16 %v951
  %v1566 = vunpack.c.h.b16 %v951
  %v1567 = vunpack.c.l.b16 %v952
  %v1568 = vunpack.c.h.b16 %v952
  %v1569 = vunpack.c.l.b16 %v953
  %v1570 = vunpack.c.h.b16 %v953
  %v1571 = vunpack.c.l.b16 %v954
  %v1572 = vunpack.c.h.b16 %v954
  %v1573 = vunpack.c.l.b16 %v955
  %v1574 = vunpack.c.h.b16 %v955
  %v1575 = vunpack.c.l.b16 %v956
  %v1576 = vunpack.c.h.b16 %v956
  %v1577 = vunpack.c.l.b16 %v957
  %v1578 = vunpack.c.h.b16 %v957
  %v1579 = vunpack.c.l.b16 %v958
  %v1580 = vunpack.c.h.b16 %v958
  %v1581 = vunpack.c.l.b16 %v959
  %v1582 = vunpack.c.h.b16 %v959
  %v1583 = vunpack.c.l.b16 %v960
  %v1584 = vunpack.c.h.b16 %v960
  %v1585 = vunpack.c.l.b16 %v961
  %v1586 = vunpack.c.h.b16 %v961
  %v1587 = vunpack.c.l.b16 %v962
  %v1588 = vunpack.c.h.b16 %v962
  %v1589 = vunpack.c.l.b16 %v963
  %v1590 = vunpack.c.h.b16 %v963
  %v1591 = vunpack.c.l.b16 %v964
  %v1592 = vunpack.c.h.b16 %v964
  %v1593 = vunpack.c.l.b16 %v965
  %v1594 = vunpack.c.h.b16 %v965
  %v1595 = vunpack.c.l.b16 %v966
  %v1596 = vunpack.c.h.b16 %v966
  %v1597 = vunpack.c.l.b16 %v967
  %v1598 = vunpack.c.h.b16 %v967
  %v1599 = vunpack.c.l.b16 %v968
  %v1600 = vunpack.c.h.b16 %v968
  %v1601 = vunpack.c.l.b16 %v969
  %v1602 = vunpack.c.h.b16 %v969
  %v1603 = vunpack.c.l.b16 %v970
  %v1604 = vunpack.c.h.b16 %v970
  %v1605 = vunpack.c.l.b16 %v971
  %v1606 = vunpack.c.h.b16 %v971
  %v1607 = vunpack.c.l.b16 %v972
  %v1608 = vunpack.c.h.b16 %v972
  %v1609 = vunpack.c.l.b16 %v973
  %v1610 = vunpack.c.h.b16 %v973
  %v1611 = vunpack.c.l.b16 %v974
  %v1612 = vunpack.c.h.b16 %v974
  %v1613 = vunpack.c.l.b16 %v975
  %v1614 = vunpack.c.h.b16 %v975
  %v1615 = vunpack.c.l.b16 %v976
  %v1616 = vunpack.c.h.b16 %v976
  %v1617 = vunpack.c.l.b16 %v977
  %v1618 = vunpack.c.h.b16 %v977
  %v1619 = vunpack.c.l.b16 %v978
  %v1620 = vunpack.c.h.b16 %v978
  %v1621 = vunpack.c.l.b16 %v979
  %v1622 = vunpack.c.h.b16 %v979
  %v1623 = vunpack.c.l.b16 %v980
  %v1624 = vunpack.c.h.b16 %v980
  %v1625 = vunpack.c.l.b16 %v981
  %v1626 = vunpack.c.h.b16 %v981
  %v1627 = vunpack.c.l.b16 %v982
  %v1628 = vunpack.c.h.b16 %v982
  %v1629 = vunpack.c.l.b16 %v983
  %v1630 = vunpack.c.h.b16 %v983
  %v1631 = vunpack.c.l.b16 %v984
  %v1632 = vunpack.c.h.b16 %v984
  %v1633 = vunpack.c.l.b16 %v985
  %v1634 = vunpack.c.h.b16 %v985
  %v1635 = vunpack.c.l.b16 %v986
  %v1636 = vunpack.c.h.b16 %v986
  %v1637 = vunpack.c.l.b16 %v987
  %v1638 = vunpack.c.h.b16 %v987
  %v1639 = vunpack.c.l.b16 %v988
  %v1640 = vunpack.c.h.b16 %v988
  %v1641 = vunpack.c.l.b16 %v989
  %v1642 = vunpack.c.h.b16 %v989
  %v1643 = vunpack.c.l.b16 %v990
  %v1644 = vunpack.c.h.b16 %v990
  %v1645 = vunpack.c.l.b16 %v991
  %v1646 = vunpack.c.h.b16 %v991
  %v1647 = vunpack.c.l.b16 %v992
  %v1648 = vunpack.c.h.b16 %v992
  %v1649 = vunpack.c.l.b16 %v993
  %v1650 = vunpack.c.h.b16 %v993
  %v1651 = vunpack.c.l.b16 %v994
  %v1652 = vunpack.c.h.b16 %v994
  %v1653 = vunpack.c.l.b16 %v995
  %v1654 = vunpack.c.h.b16 %v995
  %v1655 = vunpack.c.l.b16 %v996
  %v1656 = vunpack.c.h.b16 %v996
  %v1657 = vunpack.c.l.b16 %v997
  %v1658 = vunpack.c.h.b16 %v997
  %v1659 = vunpack.c.l.b16 %v998
  %v1660 = vunpack.c.h.b16 %v998
  %v1661 = vunpack.c.l.b16 %v999
  %v1662 = vunpack.c.h.b16 %v999
  %v1663 = vunpack.c.l.b16 %v1000
  %v1664 = vunpack.c.h.b16 %v1000
  %v1665 = vunpack.c.l.b16 %v1001
  %v1666 = vunpack.c.h.b16 %v1001
  %v1667 = vunpack.c.l.b16 %v1002
  %v1668 = vunpack.c.h.b16 %v1002
  %v1669 = vunpack.c.l.b16 %v1003
  %v1670 = vunpack.c.h.b16 %v1003
  %v1671 = vunpack.c.l.b16 %v1004
  %v1672 = vunpack.c.h.b16 %v1004
  %v1673 = vunpack.c.l.b16 %v1005
  %v1674 = vunpack.c.h.b16 %v1005
  %v1675 = vunpack.c.l.b16 %v1006
  %v1676 = vunpack.c.h.b16 %v1006
  %v1677 = vunpack.c.l.b16 %v1007
  %v1678 = vunpack.c.h.b16 %v1007
  %v1679 = vunpack.c.l.b16 %v1008
  %v1680 = vunpack.c.h.b16 %v1008
  %v1681 = vunpack.c.l.b16 %v1009
  %v1682 = vunpack.c.h.b16 %v1009
  %v1683 = vunpack.c.l.b16 %v1010
  %v1684 = vunpack.c.h.b16 %v1010
  %v1685 = vunpack.c.l.b16 %v1011
  %v1686 = vunpack.c.h.b16 %v1011
  %v1687 = vunpack.c.l.b16 %v1012
  %v1688 = vunpack.c.h.b16 %v1012
  %v1689 = vunpack.c.l.b16 %v1013
  %v1690 = vunpack.c.h.b16 %v1013
  %v1691 = vunpack.c.l.b16 %v1014
  %v1692 = vunpack.c.h.b16 %v1014
  %v1693 = vunpack.c.l.b16 %v1015
  %v1694 = vunpack.c.h.b16 %v1015
  %v1695 = vunpack.c.l.b16 %v1016
  %v1696 = vunpack.c.h.b16 %v1016
  %v1697 = vunpack.c.l.b16 %v1017
  %v1698 = vunpack.c.h.b16 %v1017
  %v1699 = vunpack.c.l.b16 %v1018
  %v1700 = vunpack.c.h.b16 %v1018
  %v1701 = vunpack.c.l.b16 %v1019
  %v1702 = vunpack.c.h.b16 %v1019
  %v1703 = vunpack.c.l.b16 %v1020
  %v1704 = vunpack.c.h.b16 %v1020
  %v1705 = vunpack.c.l.b16 %v1021
  %v1706 = vunpack.c.h.b16 %v1021
  %v1707 = vunpack.c.l.b16 %v1022
  %v1708 = vunpack.c.h.b16 %v1022
  %v1709 = vunpack.c.l.b16 %v1023
  %v1710 = vunpack.c.h.b16 %v1023
  %v1711 = vunpack.c.l.b16 %v1024
  %v1712 = vunpack.c.h.b16 %v1024
  %v1713 = vunpack.c.l.b16 %v1025
  %v1714 = vunpack.c.h.b16 %v1025
  %v1715 = vunpack.c.l.b16 %v1026
  %v1716 = vunpack.c.h.b16 %v1026
  %v1717 = vunpack.c.l.b16 %v1027
  %v1718 = vunpack.c.h.b16 %v1027
  %v1719 = vunpack.c.l.b16 %v1028
  %v1720 = vunpack.c.h.b16 %v1028
  %v1721 = vunpack.c.l.b16 %v1029
  %v1722 = vunpack.c.h.b16 %v1029
  %v1723 = vunpack.c.l.b16 %v1030
  %v1724 = vunpack.c.h.b16 %v1030
  %v1725 = vunpack.c.l.b16 %v1031
  %v1726 = vunpack.c.h.b16 %v1031
  %v1727 = vunpack.c.l.b16 %v1032
  %v1728 = vunpack.c.h.b16 %v1032
  %v1729 = vunpack.c.l.b16 %v1033
  %v1730 = vunpack.c.h.b16 %v1033
  %v1731 = vunpack.c.l.b16 %v1034
  %v1732 = vunpack.c.h.b16 %v1034
  %v1733 = vunpack.c.l.b16 %v1035
  %v1734 = vunpack.c.h.b16 %v1035
  %v1735 = vunpack.c.l.b16 %v1036
  %v1736 = vunpack.c.h.b16 %v1036
  %v1737 = vunpack.c.l.b16 %v1037
  %v1738 = vunpack.c.h.b16 %v1037
  %v1739 = vunpack.c.l.b16 %v1038
  %v1740 = vunpack.c.h.b16 %v1038
  %v1741 = vunpack.c.l.b16 %v1039
  %v1742 = vunpack.c.h.b16 %v1039
  %v1743 = vunpack.c.l.b16 %v1040
  %v1744 = vunpack.c.h.b16 %v1040
  %v1745 = vunpack.c.l.b16 %v1041
  %v1746 = vunpack.c.h.b16 %v1041
  %v1747 = vunpack.c.l.b16 %v1042
  %v1748 = vunpack.c.h.b16 %v1042
  %v1749 = vunpack.c.l.b16 %v1043
  %v1750 = vunpack.c.h.b16 %v1043
  %v1751 = vunpack.c.l.b16 %v1044
  %v1752 = vunpack.c.h.b16 %v1044
  %v1753 = vunpack.c.l.b16 %v1045
  %v1754 = vunpack.c.h.b16 %v1045
  %v1755 = vunpack.c.l.b16 %v1046
  %v1756 = vunpack.c.h.b16 %v1046
  %v1757 = vunpack.c.l.b16 %v1047
  %v1758 = vunpack.c.h.b16 %v1047
  %v1759 = vunpack.c.l.b16 %v1048
  %v1760 = vunpack.c.h.b16 %v1048
  %v1761 = vunpack.c.l.b16 %v1049
  %v1762 = vunpack.c.h.b16 %v1049
  %v1763 = vunpack.c.l.b16 %v1050
  %v1764 = vunpack.c.h.b16 %v1050
  %v1765 = vunpack.c.l.b16 %v1051
  %v1766 = vunpack.c.h.b16 %v1051
  %v1767 = vunpack.c.l.b16 %v1052
  %v1768 = vunpack.c.h.b16 %v1052
  %v1769 = vunpack.c.l.b16 %v1053
  %v1770 = vunpack.c.h.b16 %v1053
  %v1771 = vunpack.c.l.b16 %v1054
  %v1772 = vunpack.c.h.b16 %v1054
  %v1773 = vunpack.c.l.b16 %v1055
  %v1774 = vunpack.c.h.b16 %v1055
  %v1775 = vunpack.c.l.b16 %v1056
  %v1776 = vunpack.c.h.b16 %v1056
  %v1777 = vunpack.c.l.b16 %v1057
  %v1778 = vunpack.c.h.b16 %v1057
  %v1779 = vunpack.c.l.b16 %v1058
  %v1780 = vunpack.c.h.b16 %v1058
  %v1781 = vunpack.c.l.b16 %v1059
  %v1782 = vunpack.c.h.b16 %v1059
  %v1783 = vunpack.c.l.b16 %v1060
  %v1784 = vunpack.c.h.b16 %v1060
  %v1785 = vunpack.c.l.b16 %v1061
  %v1786 = vunpack.c.h.b16 %v1061
  %v1787 = vunpack.c.l.b16 %v1062
  %v1788 = vunpack.c.h.b16 %v1062
  %v1789 = vunpack.c.l.b16 %v1063
  %v1790 = vunpack.c.h.b16 %v1063
  %v1791 = vunpack.c.l.b16 %v1064
  %v1792 = vunpack.c.h.b16 %v1064
  %v1793 = vunpack.c.l.b16 %v1065
  %v1794 = vunpack.c.h.b16 %v1065
  %v1795 = vunpack.c.l.b16 %v1066
  %v1796 = vunpack.c.h.b16 %v1066
  %v1797 = vunpack.c.l.b16 %v1067
  %v1798 = vunpack.c.h.b16 %v1067
  %v1799 = vunpack.c.l.b16 %v1068
  %v1800 = vunpack.c.h.b16 %v1068
  %v1801 = vunpack.c.l.b16 %v1069
  %v1802 = vunpack.c.h.b16 %v1069
  %v1803 = vunpack.c.l.b16 %v1070
  %v1804 = vunpack.c.h.b16 %v1070
  %v1805 = vunpack.c.l.b16 %v1071
  %v1806 = vunpack.c.h.b16 %v1071
  %v1807 = vunpack.c.l.b16 %v1072
  %v1808 = vunpack.c.h.b16 %v1072
  %v1809 = vunpack.c.l.b16 %v1073
  %v1810 = vunpack.c.h.b16 %v1073
  %v1811 = vunpack.c.l.b16 %v1074
  %v1812 = vunpack.c.h.b16 %v1074
  %v1813 = vunpack.c.l.b16 %v1075
  %v1814 = vunpack.c.h.b16 %v1075
  %v1815 = vunpack.c.l.b16 %v1076
  %v1816 = vunpack.c.h.b16 %v1076
  %v1817 = vunpack.c.l.b16 %v1077
  %v1818 = vunpack.c.h.b16 %v1077
  %v1819 = vunpack.c.l.b16 %v1078
  %v1820 = vunpack.c.h.b16 %v1078
  %v1821 = vunpack.c.l.b16 %v1079
  %v1822 = vunpack.c.h.b16 %v1079
  %v1823 = vunpack.c.l.b16 %v1080
  %v1824 = vunpack.c.h.b16 %v1080
  %v1825 = vunpack.c.l.b16 %v1081
  %v1826 = vunpack.c.h.b16 %v1081
  %v1827 = vunpack.c.l.b16 %v1082
  %v1828 = vunpack.c.h.b16 %v1082
  %v1829 = vunpack.c.l.b16 %v1083
  %v1830 = vunpack.c.h.b16 %v1083
  %v1831 = vunpack.c.l.b16 %v1084
  %v1832 = vunpack.c.h.b16 %v1084
  %v1833 = vunpack.c.l.b16 %v1085
  %v1834 = vunpack.c.h.b16 %v1085
  %v1835 = vunpack.c.l.b16 %v1086
  %v1836 = vunpack.c.h.b16 %v1086
  %v1837 = vunpack.c.l.b16 %v1087
  %v1838 = vunpack.c.h.b16 %v1087
  %v1839 = vunpack.c.l.b16 %v1088
  %v1840 = vunpack.c.h.b16 %v1088
  %v1841 = vunpack.c.l.b16 %v1089
  %v1842 = vunpack.c.h.b16 %v1089
  %v1843 = vunpack.c.l.b16 %v1090
  %v1844 = vunpack.c.h.b16 %v1090
  %v1845 = vunpack.c.l.b16 %v1091
  %v1846 = vunpack.c.h.b16 %v1091
  %v1847 = vunpack.c.l.b16 %v1092
  %v1848 = vunpack.c.h.b16 %v1092
  %v1849 = vunpack.c.l.b16 %v1093
  %v1850 = vunpack.c.h.b16 %v1093
  %v1851 = vunpack.c.l.b16 %v1094
  %v1852 = vunpack.c.h.b16 %v1094
  %v1853 = vunpack.c.l.b16 %v1095
  %v1854 = vunpack.c.h.b16 %v1095
  %v1855 = vunpack.c.l.b16 %v1096
  %v1856 = vunpack.c.h.b16 %v1096
  %v1857 = vunpack.c.l.b16 %v1097
  %v1858 = vunpack.c.h.b16 %v1097
  %v1859 = vunpack.c.l.b16 %v1098
  %v1860 = vunpack.c.h.b16 %v1098
  %v1861 = vunpack.c.l.b16 %v1099
  %v1862 = vunpack.c.h.b16 %v1099
  %v1863 = vunpack.c.l.b16 %v1100
  %v1864 = vunpack.c.h.b16 %v1100
  %v1865 = vunpack.c.l.b16 %v1101
  %v1866 = vunpack.c.h.b16 %v1101
  %v1867 = vunpack.c.l.b16 %v1102
  %v1868 = vunpack.c.h.b16 %v1102
  %v1869 = vunpack.c.l.b16 %v1103
  %v1870 = vunpack.c.h.b16 %v1103
  %v1871 = vunpack.c.l.b16 %v1104
  %v1872 = vunpack.c.h.b16 %v1104
  %v1873 = vunpack.c.l.b16 %v1105
  %v1874 = vunpack.c.h.b16 %v1105
  %v1875 = vunpack.c.l.b16 %v1106
  %v1876 = vunpack.c.h.b16 %v1106
  %v1877 = vunpack.c.l.b16 %v1107
  %v1878 = vunpack.c.h.b16 %v1107
  %v1879 = vunpack.c.l.b16 %v1108
  %v1880 = vunpack.c.h.b16 %v1108
  %v1881 = vunpack.c.l.b16 %v1109
  %v1882 = vunpack.c.h.b16 %v1109
  %v1883 = vunpack.c.l.b16 %v1110
  %v1884 = vunpack.c.h.b16 %v1110
  %v1885 = vunpack.c.l.b16 %v1111
  %v1886 = vunpack.c.h.b16 %v1111
  %v1887 = vunpack.c.l.b16 %v1112
  %v1888 = vunpack.c.h.b16 %v1112
  %v1889 = vunpack.c.l.b16 %v1113
  %v1890 = vunpack.c.h.b16 %v1113
  %v1891 = vunpack.c.l.b16 %v1114
  %v1892 = vunpack.c.h.b16 %v1114
  %v1893 = vunpack.c.l.b16 %v1115
  %v1894 = vunpack.c.h.b16 %v1115
  %v1895 = vunpack.c.l.b16 %v1116
  %v1896 = vunpack.c.h.b16 %v1116
  %v1897 = vunpack.c.l.b16 %v1117
  %v1898 = vunpack.c.h.b16 %v1117
  %v1899 = vunpack.c.l.b16 %v1118
  %v1900 = vunpack.c.h.b16 %v1118
  %v1901 = vunpack.c.l.b16 %v1119
  %v1902 = vunpack.c.h.b16 %v1119
  %v1903 = vunpack.c.l.b16 %v1120
  %v1904 = vunpack.c.h.b16 %v1120
  %v1905 = vunpack.c.l.b16 %v1121
  %v1906 = vunpack.c.h.b16 %v1121
  %v1907 = vunpack.c.l.b16 %v1122
  %v1908 = vunpack.c.h.b16 %v1122
  %v1909 = vunpack.c.l.b16 %v1123
  %v1910 = vunpack.c.h.b16 %v1123
  %v1911 = vunpack.c.l.b16 %v1124
  %v1912 = vunpack.c.h.b16 %v1124
  %v1913 = vunpack.c.l.b16 %v1125
  %v1914 = vunpack.c.h.b16 %v1125
  %v1915 = vunpack.c.l.b16 %v1126
  %v1916 = vunpack.c.h.b16 %v1126
  %v1917 = vpack.c.b16 %v1409, %v1405
  %v1918 = vpack.c.b16 %v1410, %v1406
  %v1919 = vpack.c.b16 %v1411, %v1407
  %v1920 = vpack.c.b16 %v1412, %v1408
  %v1921 = vpack.c.b16 %v1417, %v1413
  %v1922 = vpack.c.b16 %v1418, %v1414
  %v1923 = vpack.c.b16 %v1419, %v1415
  %v1924 = vpack.c.b16 %v1420, %v1416
  %v1925 = vpack.c.b16 %v1425, %v1421
  %v1926 = vpack.c.b16 %v1426, %v1422
  %v1927 = vpack.c.b16 %v1427, %v1423
  %v1928 = vpack.c.b16 %v1428, %v1424
  %v1929 = vpack.c.b16 %v1433, %v1429
  %v1930 = vpack.c.b16 %v1434, %v1430
  %v1931 = vpack.c.b16 %v1435, %v1431
  %v1932 = vpack.c.b16 %v1436, %v1432
  %v1933 = vpack.c.b16 %v1441, %v1437
  %v1934 = vpack.c.b16 %v1442, %v1438
  %v1935 = vpack.c.b16 %v1443, %v1439
  %v1936 = vpack.c.b16 %v1444, %v1440
  %v1937 = vpack.c.b16 %v1449, %v1445
  %v1938 = vpack.c.b16 %v1450, %v1446
  %v1939 = vpack.c.b16 %v1451, %v1447
  %v1940 = vpack.c.b16 %v1452, %v1448
  %v1941 = vpack.c.b16 %v1457, %v1453
  %v1942 = vpack.c.b16 %v1458, %v1454
  %v1943 = vpack.c.b16 %v1459, %v1455
  %v1944 = vpack.c.b16 %v1460, %v1456
  %v1945 = vpack.c.b16 %v1465, %v1461
  %v1946 = vpack.c.b16 %v1466, %v1462
  %v1947 = vpack.c.b16 %v1467, %v1463
  %v1948 = vpack.c.b16 %v1468, %v1464
  %v1949 = vpack.c.b16 %v1473, %v1469
  %v1950 = vpack.c.b16 %v1474, %v1470
  %v1951 = vpack.c.b16 %v1475, %v1471
  %v1952 = vpack.c.b16 %v1476, %v1472
  %v1953 = vpack.c.b16 %v1481, %v1477
  %v1954 = vpack.c.b16 %v1482, %v1478
  %v1955 = vpack.c.b16 %v1483, %v1479
  %v1956 = vpack.c.b16 %v1484, %v1480
  %v1957 = vpack.c.b16 %v1489, %v1485
  %v1958 = vpack.c.b16 %v1490, %v1486
  %v1959 = vpack.c.b16 %v1491, %v1487
  %v1960 = vpack.c.b16 %v1492, %v1488
  %v1961 = vpack.c.b16 %v1497, %v1493
  %v1962 = vpack.c.b16 %v1498, %v1494
  %v1963 = vpack.c.b16 %v1499, %v1495
  %v1964 = vpack.c.b16 %v1500, %v1496
  %v1965 = vpack.c.b16 %v1505, %v1501
  %v1966 = vpack.c.b16 %v1506, %v1502
  %v1967 = vpack.c.b16 %v1507, %v1503
  %v1968 = vpack.c.b16 %v1508, %v1504
  %v1969 = vpack.c.b16 %v1513, %v1509
  %v1970 = vpack.c.b16 %v1514, %v1510
  %v1971 = vpack.c.b16 %v1515, %v1511
  %v1972 = vpack.c.b16 %v1516, %v1512
  %v1973 = vpack.c.b16 %v1521, %v1517
  %v1974 = vpack.c.b16 %v1522, %v1518
  %v1975 = vpack.c.b16 %v1523, %v1519
  %v1976 = vpack.c.b16 %v1524, %v1520
  %v1977 = vpack.c.b16 %v1529, %v1525
  %v1978 = vpack.c.b16 %v1530, %v1526
  %v1979 = vpack.c.b16 %v1531, %v1527
  %v1980 = vpack.c.b16 %v1532, %v1528
  %v1981 = vpack.c.b16 %v1537, %v1533
  %v1982 = vpack.c.b16 %v1538, %v1534
  %v1983 = vpack.c.b16 %v1539, %v1535
  %v1984 = vpack.c.b16 %v1540, %v1536
  %v1985 = vpack.c.b16 %v1545, %v1541
  %v1986 = vpack.c.b16 %v1546, %v1542
  %v1987 = vpack.c.b16 %v1547, %v1543
  %v1988 = vpack.c.b16 %v1548, %v1544
  %v1989 = vpack.c.b16 %v1553, %v1549
  %v1990 = vpack.c.b16 %v1554, %v1550
  %v1991 = vpack.c.b16 %v1555, %v1551
  %v1992 = vpack.c.b16 %v1556, %v1552
  %v1993 = vpack.c.b16 %v1561, %v1557
  %v1994 = vpack.c.b16 %v1562, %v1558
  %v1995 = vpack.c.b16 %v1563, %v1559
  %v1996 = vpack.c.b16 %v1564, %v1560
  %v1997 = vpack.c.b16 %v1569, %v1565
  %v1998 = vpack.c.b16 %v1570, %v1566
  %v1999 = vpack.c.b16 %v1571, %v1567
  %v2000 = vpack.c.b16 %v1572, %v1568
  %v2001 = vpack.c.b16 %v1577, %v1573
  %v2002 = vpack.c.b16 %v1578, %v1574
  %v2003 = vpack.c.b16 %v1579, %v1575
  %v2004 = vpack.c.b16 %v1580, %v1576
  %v2005 = vpack.c.b16 %v1585, %v1581
  %v2006 = vpack.c.b16 %v1586, %v1582
  %v2007 = vpack.c.b16 %v1587, %v1583
  %v2008 = vpack.c.b16 %v1588, %v1584
  %v2009 = vpack.c.b16 %v1593, %v1589
  %v2010 = vpack.c.b16 %v1594, %v1590
  %v2011 = vpack.c.b16 %v1595, %v1591
  %v2012 = vpack.c.b16 %v1596, %v1592
  %v2013 = vpack.c.b16 %v1601, %v1597
  %v2014 = vpack.c.b16 %v1602, %v1598
  %v2015 = vpack.c.b16 %v1603, %v1599
  %v2016 = vpack.c.b16 %v1604, %v1600
  %v2017 = vpack.c.b16 %v1609, %v1605
  %v2018 = vpack.c.b16 %v1610, %v1606
  %v2019 = vpack.c.b16 %v1611, %v1607
  %v2020 = vpack.c.b16 %v1612, %v1608
  %v2021 = vpack.c.b16 %v1617, %v1613
  %v2022 = vpack.c.b16 %v1618, %v1614
  %v2023 = vpack.c.b16 %v1619, %v1615
  %v2024 = vpack.c.b16 %v1620, %v1616
  %v2025 = vpack.c.b16 %v1625, %v1621
  %v2026 = vpack.c.b16 %v1626, %v1622
  %v2027 = vpack.c.b16 %v1627, %v1623
  %v2028 = vpack.c.b16 %v1628, %v1624
  %v2029 = vpack.c.b16 %v1633, %v1629
  %v2030 = vpack.c.b16 %v1634, %v1630
  %v2031 = vpack.c.b16 %v1635, %v1631
  %v2032 = vpack.c.b16 %v1636, %v1632
  %v2033 = vpack.c.b16 %v1641, %v1637
  %v2034 = vpack.c.b16 %v1642, %v1638
  %v2035 = vpack.c.b16 %v1643, %v1639
  %v2036 = vpack.c.b16 %v1644, %v1640
  %v2037 = vpack.c.b16 %v1649, %v1645
  %v2038 = vpack.c.b16 %v1650, %v1646
  %v2039 = vpack.c.b16 %v1651, %v1647
  %v2040 = vpack.c.b16 %v1652, %v1648
  %v2041 = vpack.c.b16 %v1657, %v1653
  %v2042 = vpack.c.b16 %v1658, %v1654
  %v2043 = vpack.c.b16 %v1659, %v1655
  %v2044 = vpack.c.b16 %v1660, %v1656
  %v2045 = vpack.c.b16 %v1665, %v1661
  %v2046 = vpack.c.b16 %v1666, %v1662
  %v2047 = vpack.c.b16 %v1667, %v1663
  %v2048 = vpack.c.b16 %v1668, %v1664
  %v2049 = vpack.c.b16 %v1673, %v1669
  %v2050 = vpack.c.b16 %v1674, %v1670
  %v2051 = vpack.c.b16 %v1675, %v1671
  %v2052 = vpack.c.b16 %v1676, %v1672
  %v2053 = vpack.c.b16 %v1681, %v1677
  %v2054 = vpack.c.b16 %v1682, %v1678
  %v2055 = vpack.c.b16 %v1683, %v1679
  %v2056 = vpack.c.b16 %v1684, %v1680
  %v2057 = vpack.c.b16 %v1689, %v1685
  %v2058 = vpack.c.b16 %v1690, %v1686
  %v2059 = vpack.c.b16 %v1691, %v1687
  %v2060 = vpack.c.b16 %v1692, %v1688
  %v2061 = vpack.c.b16 %v1697, %v1693
  %v2062 = vpack.c.b16 %v1698, %v1694
  %v2063 = vpack.c.b16 %v1699, %v1695
  %v2064 = vpack.c.b16 %v1700, %v1696
  %v2065 = vpack.c.b16 %v1705, %v1701
  %v2066 = vpack.c.b16 %v1706, %v1702
  %v2067 = vpack.c.b16 %v1707, %v1703
  %v2068 = vpack.c.b16 %v1708, %v1704
  %v2069 = vpack.c.b16 %v1713, %v1709
  %v2070 = vpack.c.b16 %v1714, %v1710
  %v2071 = vpack.c.b16 %v1715, %v1711
  %v2072 = vpack.c.b16 %v1716, %v1712
  %v2073 = vpack.c.b16 %v1721, %v1717
  %v2074 = vpack.c.b16 %v1722, %v1718
  %v2075 = vpack.c.b16 %v1723, %v1719
  %v2076 = vpack.c.b16 %v1724, %v1720
  %v2077 = vpack.c.b16 %v1729, %v1725
  %v2078 = vpack.c.b16 %v1730, %v1726
  %v2079 = vpack.c.b16 %v1731, %v1727
  %v2080 = vpack.c.b16 %v1732, %v1728
  %v2081 = vpack.c.b16 %v1737, %v1733
  %v2082 = vpack.c.b16 %v1738, %v1734
  %v2083 = vpack.c.b16 %v1739, %v1735
  %v2084 = vpack.c.b16 %v1740, %v1736
  %v2085 = vpack.c.b16 %v1745, %v1741
  %v2086 = vpack.c.b16 %v1746, %v1742
  %v2087 = vpack.c.b16 %v1747, %v1743
  %v2088 = vpack.c.b16 %v1748, %v1744
  %v2089 = vpack.c.b16 %v1753, %v1749
  %v2090 = vpack.c.b16 %v1754, %v1750
  %v2091 = vpack.c.b16 %v1755, %v1751
  %v2092 = vpack.c.b16 %v1756, %v1752
  %v2093 = vpack.c.b16 %v1761, %v1757
  %v2094 = vpack.c.b16 %v1762, %v1758
  %v2095 = vpack.c.b16 %v1763, %v1759
  %v2096 = vpack.c.b16 %v1764, %v1760
  %v2097 = vpack.c.b16 %v1769, %v1765
  %v2098 = vpack.c.b16 %v1770, %v1766
  %v2099 = vpack.c.b16 %v1771, %v1767
  %v2100 = vpack.c.b16 %v1772, %v1768
  %v2101 = vpack.c.b16 %v1777, %v1773
  %v2102 = vpack.c.b16 %v1778, %v1774
  %v2103 = vpack.c.b16 %v1779, %v1775
  %v2104 = vpack.c.b16 %v1780, %v1776
  %v2105 = vpack.c.b16 %v1785, %v1781
  %v2106 = vpack.c.b16 %v1786, %v1782
  %v2107 = vpack.c.b16 %v1787, %v1783
  %v2108 = vpack.c.b16 %v1788, %v1784
  %v2109 = vpack.c.b16 %v1793, %v1789
  %v2110 = vpack.c.b16 %v1794, %v1790
  %v2111 = vpack.c.b16 %v1795, %v1791
  %v2112 = vpack.c.b16 %v1796, %v1792
  %v2113 = vpack.c.b16 %v1801, %v1797
  %v2114 = vpack.c.b16 %v1802, %v1798
  %v2115 = vpack.c.b16 %v1803, %v1799
  %v2116 = vpack.c.b16 %v1804, %v1800
  %v2117 = vpack.c.b16 %v1809, %v1805
  %v2118 = vpack.c.b16 %v1810, %v1806
  %v2119 = vpack.c.b16 %v1811, %v1807
  %v2120 = vpack.c.b16 %v1812, %v1808
  %v2121 = vpack.c.b16 %v1817, %v1813
  %v2122 = vpack.c.b16 %v1818, %v1814
  %v2123 = vpack.c.b16 %v1819, %v1815
  %v2124 = vpack.c.b16 %v1820, %v1816
  %v2125 = vpack.c.b16 %v1825, %v1821
  %v2126 = vpack.c.b16 %v1826, %v1822
  %v2127 = vpack.c.b16 %v1827, %v1823
  %v2128 = vpack.c.b16 %v1828, %v1824
  %v2129 = vpack.c.b16 %v1833, %v1829
  %v2130 = vpack.c.b16 %v1834, %v1830
  %v2131 = vpack.c.b16 %v1835, %v1831
  %v2132 = vpack.c.b16 %v1836, %v1832
  %v2133 = vpack.c.b16 %v1841, %v1837
  %v2134 = vpack.c.b16 %v1842, %v1838
  %v2135 = vpack.c.b16 %v1843, %v1839
  %v2136 = vpack.c.b16 %v1844, %v1840
  %v2137 = vpack.c.b16 %v1849, %v1845
  %v2138 = vpack.c.b16 %v1850, %v1846
  %v2139 = vpack.c.b16 %v1851, %v1847
  %v2140 = vpack.c.b16 %v1852, %v1848
  %v2141 = vpack.c.b16 %v1857, %v1853
  %v2142 = vpack.c.b16 %v1858, %v1854
  %v2143 = vpack.c.b16 %v1859, %v1855
  %v2144 = vpack.c.b16 %v1860, %v1856
  %v2145 = vpack.c.b16 %v1865, %v1861
  %v2146 = vpack.c.b16 %v1866, %v1862
  %v2147 = vpack.c.b16 %v1867, %v1863
  %v2148 = vpack.c.b16 %v1868, %v1864
  %v2149 = vpack.c.b16 %v1873, %v1869
  %v2150 = vpack.c.b16 %v1874, %v1870
  %v2151 = vpack.c.b16 %v1875, %v1871
  %v2152 = vpack.c.b16 %v1876, %v1872
  %v2153 = vpack.c.b16 %v1881, %v1877
  %v2154 = vpack.c.b16 %v1882, %v1878
  %v2155 = vpack.c.b16 %v1883, %v1879
  %v2156 = vpack.c.b16 %v1884, %v1880
  %v2157 = vpack.c.b16 %v1889, %v1885
  %v2158 = vpack.c.b16 %v1890, %v1886
  %v2159 = vpack.c.b16 %v1891, %v1887
  %v2160 = vpack.c.b16 %v1892, %v1888
  %v2161 = vpack.c.b16 %v1897, %v1893
  %v2162 = vpack.c.b16 %v1898, %v1894
  %v2163 = vpack.c.b16 %v1899, %v1895
  %v2164 = vpack.c.b16 %v1900, %v1896
  %v2165 = vpack.c.b16 %v1905, %v1901
  %v2166 = vpack.c.b16 %v1906, %v1902
  %v2167 = vpack.c.b16 %v1907, %v1903
  %v2168 = vpack.c.b16 %v1908, %v1904
  %v2169 = vpack.c.b16 %v1913, %v1909
  %v2170 = vpack.c.b16 %v1914, %v1910
  %v2171 = vpack.c.b16 %v1915, %v1911
  %v2172 = vpack.c.b16 %v1916, %v1912
  %2429 = vmatprep.subr.bf16.mxu0 %v1918
  %2430 = vmatpush1.bf16.msra.mxu0 %v1917
  %2431 = vmatprep.subr.bf16.mxu0 %v1922
  %2432 = vmatpush1.bf16.msra.mxu0 %v1921
  %2433 = vmatprep.subr.bf16.mxu0 %v1926
  %2434 = vmatpush1.bf16.msra.mxu0 %v1925
  %2435 = vmatprep.subr.bf16.mxu0 %v1930
  %2436 = vmatpush1.bf16.msra.mxu0 %v1929
  %2437 = vmatprep.subr.bf16.mxu0 %v1934
  %2438 = vmatpush1.bf16.msra.mxu0 %v1933
  %2439 = vmatprep.subr.bf16.mxu0 %v1938
  %2440 = vmatpush1.bf16.msra.mxu0 %v1937
  %2441 = vmatprep.subr.bf16.mxu0 %v1942
  %2442 = vmatpush1.bf16.msra.mxu0 %v1941
  %2443 = vmatprep.subr.bf16.mxu0 %v1946
  %2444 = vmatpush1.bf16.msra.mxu0 %v1945
  %2445 = vmatprep.subr.bf16.mxu0 %v1950
  %2446 = vmatpush1.bf16.msra.mxu0 %v1949
  %2447 = vmatprep.subr.bf16.mxu0 %v1954
  %2448 = vmatpush1.bf16.msra.mxu0 %v1953
  %2449 = vmatprep.subr.bf16.mxu0 %v1958
  %2450 = vmatpush1.bf16.msra.mxu0 %v1957
  %2451 = vmatprep.subr.bf16.mxu0 %v1962
  %2452 = vmatpush1.bf16.msra.mxu0 %v1961
  %2453 = vmatprep.subr.bf16.mxu0 %v1966
  %2454 = vmatpush1.bf16.msra.mxu0 %v1965
  %2455 = vmatprep.subr.bf16.mxu0 %v1970
  %2456 = vmatpush1.bf16.msra.mxu0 %v1969
  %2457 = vmatprep.subr.bf16.mxu0 %v1974
  %2458 = vmatpush1.bf16.msra.mxu0 %v1973
  %2459 = vmatprep.subr.bf16.mxu0 %v1978
  %2460 = vmatpush1.bf16.msra.mxu0 %v1977
  %2461 = vmatprep.mubr.bf16.mxu0 %v864
  %2462 = vmatmul.mubr.bf16.gmra.mrb[0].mxu0 %v863
  %v2463 = vpop.f32.mrb[0].mxu0
  %v2464 = vadd.f32 %v1132, %v2463
  %v2465 = vpop.f32.mrb[0].mxu0
  %v2466 = vadd.f32 %v1136, %v2465
  %v2467 = vpop.f32.mrb[0].mxu0
  %v2468 = vadd.f32 %v1132, %v2467
  %v2469 = vpop.f32.mrb[0].mxu0
  %v2470 = vadd.f32 %v1136, %v2469
  %2471 = vdwg.mxu0
  %2472 = vmatprep.subr.bf16.mxu0 %v1982
  %2473 = vmatpush1.bf16.msra.mxu0 %v1981
  %2474 = vmatprep.subr.bf16.mxu0 %v1986
  %2475 = vmatpush1.bf16.msra.mxu0 %v1985
  %2476 = vmatprep.subr.bf16.mxu0 %v1990
  %2477 = vmatpush1.bf16.msra.mxu0 %v1989
  %2478 = vmatprep.subr.bf16.mxu0 %v1994
  %2479 = vmatpush1.bf16.msra.mxu0 %v1993
  %2480 = vmatprep.subr.bf16.mxu0 %v1998
  %2481 = vmatpush1.bf16.msra.mxu0 %v1997
  %2482 = vmatprep.subr.bf16.mxu0 %v2002
  %2483 = vmatpush1.bf16.msra.mxu0 %v2001
  %2484 = vmatprep.subr.bf16.mxu0 %v2006
  %2485 = vmatpush1.bf16.msra.mxu0 %v2005
  %2486 = vmatprep.subr.bf16.mxu0 %v2010
  %2487 = vmatpush1.bf16.msra.mxu0 %v2009
  %2488 = vmatprep.subr.bf16.mxu0 %v2014
  %2489 = vmatpush1.bf16.msra.mxu0 %v2013
  %2490 = vmatprep.subr.bf16.mxu0 %v2018
  %2491 = vmatpush1.bf16.msra.mxu0 %v2017
  %2492 = vmatprep.subr.bf16.mxu0 %v2022
  %2493 = vmatpush1.bf16.msra.mxu0 %v2021
  %2494 = vmatprep.subr.bf16.mxu0 %v2026
  %2495 = vmatpush1.bf16.msra.mxu0 %v2025
  %2496 = vmatprep.subr.bf16.mxu0 %v2030
  %2497 = vmatpush1.bf16.msra.mxu0 %v2029
  %2498 = vmatprep.subr.bf16.mxu0 %v2034
  %2499 = vmatpush1.bf16.msra.mxu0 %v2033
  %2500 = vmatprep.subr.bf16.mxu0 %v2038
  %2501 = vmatpush1.bf16.msra.mxu0 %v2037
  %2502 = vmatprep.subr.bf16.mxu0 %v2042
  %2503 = vmatpush1.bf16.msra.mxu0 %v2041
  %2504 = vmatprep.mubr.bf16.mxu0 %v866
  %2505 = vmatmul.mubr.bf16.gmra.mrb[0].mxu0 %v865
  %v2506 = vpop.f32.mrb[0].mxu0
  %v2507 = vadd.f32 %v2464, %v2506
  %v2508 = vpop.f32.mrb[0].mxu0
  %v2509 = vadd.f32 %v2466, %v2508
  %v2510 = vpop.f32.mrb[0].mxu0
  %v2511 = vadd.f32 %v2468, %v2510
  %v2512 = vpop.f32.mrb[0].mxu0
  %v2513 = vadd.f32 %v2470, %v2512
  %2514 = vdwg.mxu0
  %2515 = vmatprep.subr.bf16.mxu0 %v2046
  %2516 = vmatpush1.bf16.msra.mxu0 %v2045
  %2517 = vmatprep.subr.bf16.mxu0 %v2050
  %2518 = vmatpush1.bf16.msra.mxu0 %v2049
  %2519 = vmatprep.subr.bf16.mxu0 %v2054
  %2520 = vmatpush1.bf16.msra.mxu0 %v2053
  %2521 = vmatprep.subr.bf16.mxu0 %v2058
  %2522 = vmatpush1.bf16.msra.mxu0 %v2057
  %2523 = vmatprep.subr.bf16.mxu0 %v2062
  %2524 = vmatpush1.bf16.msra.mxu0 %v2061
  %2525 = vmatprep.subr.bf16.mxu0 %v2066
  %2526 = vmatpush1.bf16.msra.mxu0 %v2065
  %2527 = vmatprep.subr.bf16.mxu0 %v2070
  %2528 = vmatpush1.bf16.msra.mxu0 %v2069
  %2529 = vmatprep.subr.bf16.mxu0 %v2074
  %2530 = vmatpush1.bf16.msra.mxu0 %v2073
  %2531 = vmatprep.subr.bf16.mxu0 %v2078
  %2532 = vmatpush1.bf16.msra.mxu0 %v2077
  %2533 = vmatprep.subr.bf16.mxu0 %v2082
  %2534 = vmatpush1.bf16.msra.mxu0 %v2081
  %2535 = vmatprep.subr.bf16.mxu0 %v2086
  %2536 = vmatpush1.bf16.msra.mxu0 %v2085
  %2537 = vmatprep.subr.bf16.mxu0 %v2090
  %2538 = vmatpush1.bf16.msra.mxu0 %v2089
  %2539 = vmatprep.subr.bf16.mxu0 %v2094
  %2540 = vmatpush1.bf16.msra.mxu0 %v2093
  %2541 = vmatprep.subr.bf16.mxu0 %v2098
  %2542 = vmatpush1.bf16.msra.mxu0 %v2097
  %2543 = vmatprep.subr.bf16.mxu0 %v2102
  %2544 = vmatpush1.bf16.msra.mxu0 %v2101
  %2545 = vmatprep.subr.bf16.mxu0 %v2106
  %2546 = vmatpush1.bf16.msra.mxu0 %v2105
  %2547 = vmatprep.mubr.bf16.mxu0 %v868
  %2548 = vmatmul.mubr.bf16.gmra.mrb[0].mxu0 %v867
  %v2549 = vpop.f32.mrb[0].mxu0
  %v2550 = vadd.f32 %v2507, %v2549
  %v2551 = vpop.f32.mrb[0].mxu0
  %v2552 = vadd.f32 %v2509, %v2551
  %v2553 = vpop.f32.mrb[0].mxu0
  %v2554 = vadd.f32 %v2511, %v2553
  %v2555 = vpop.f32.mrb[0].mxu0
  %v2556 = vadd.f32 %v2513, %v2555
  %2557 = vdwg.mxu0
  %2558 = vmatprep.subr.bf16.mxu0 %v2110
  %2559 = vmatpush1.bf16.msra.mxu0 %v2109
  %2560 = vmatprep.subr.bf16.mxu0 %v2114
  %2561 = vmatpush1.bf16.msra.mxu0 %v2113
  %2562 = vmatprep.subr.bf16.mxu0 %v2118
  %2563 = vmatpush1.bf16.msra.mxu0 %v2117
  %2564 = vmatprep.subr.bf16.mxu0 %v2122
  %2565 = vmatpush1.bf16.msra.mxu0 %v2121
  %2566 = vmatprep.subr.bf16.mxu0 %v2126
  %2567 = vmatpush1.bf16.msra.mxu0 %v2125
  %2568 = vmatprep.subr.bf16.mxu0 %v2130
  %2569 = vmatpush1.bf16.msra.mxu0 %v2129
  %2570 = vmatprep.subr.bf16.mxu0 %v2134
  %2571 = vmatpush1.bf16.msra.mxu0 %v2133
  %2572 = vmatprep.subr.bf16.mxu0 %v2138
  %2573 = vmatpush1.bf16.msra.mxu0 %v2137
  %2574 = vmatprep.subr.bf16.mxu0 %v2142
  %2575 = vmatpush1.bf16.msra.mxu0 %v2141
  %2576 = vmatprep.subr.bf16.mxu0 %v2146
  %2577 = vmatpush1.bf16.msra.mxu0 %v2145
  %2578 = vmatprep.subr.bf16.mxu0 %v2150
  %2579 = vmatpush1.bf16.msra.mxu0 %v2149
  %2580 = vmatprep.subr.bf16.mxu0 %v2154
  %2581 = vmatpush1.bf16.msra.mxu0 %v2153
  %2582 = vmatprep.subr.bf16.mxu0 %v2158
  %2583 = vmatpush1.bf16.msra.mxu0 %v2157
  %2584 = vmatprep.subr.bf16.mxu0 %v2162
  %2585 = vmatpush1.bf16.msra.mxu0 %v2161
  %2586 = vmatprep.subr.bf16.mxu0 %v2166
  %2587 = vmatpush1.bf16.msra.mxu0 %v2165
  %2588 = vmatprep.subr.bf16.mxu0 %v2170
  %2589 = vmatpush1.bf16.msra.mxu0 %v2169
  %2590 = vmatprep.mubr.bf16.mxu0 %v870
  %2591 = vmatmul.mubr.bf16.gmra.mrb[0].mxu0 %v869
  %v2592 = vpop.f32.mrb[0].mxu0
  %v2593 = vadd.f32 %v2550, %v2592
  %v2594 = vpop.f32.mrb[0].mxu0
  %v2595 = vadd.f32 %v2552, %v2594
  %v2596 = vpop.f32.mrb[0].mxu0
  %v2597 = vadd.f32 %v2554, %v2596
  %v2598 = vpop.f32.mrb[0].mxu0
  %v2599 = vadd.f32 %v2556, %v2598
  %2600 = vdwg.mxu0
  %2601 = vmatprep.subr.bf16.mxu0 %v1920
  %2602 = vmatpush1.bf16.msra.mxu0 %v1919
  %2603 = vmatprep.subr.bf16.mxu0 %v1924
  %2604 = vmatpush1.bf16.msra.mxu0 %v1923
  %2605 = vmatprep.subr.bf16.mxu0 %v1928
  %2606 = vmatpush1.bf16.msra.mxu0 %v1927
  %2607 = vmatprep.subr.bf16.mxu0 %v1932
  %2608 = vmatpush1.bf16.msra.mxu0 %v1931
  %2609 = vmatprep.subr.bf16.mxu0 %v1936
  %2610 = vmatpush1.bf16.msra.mxu0 %v1935
  %2611 = vmatprep.subr.bf16.mxu0 %v1940
  %2612 = vmatpush1.bf16.msra.mxu0 %v1939
  %2613 = vmatprep.subr.bf16.mxu0 %v1944
  %2614 = vmatpush1.bf16.msra.mxu0 %v1943
  %2615 = vmatprep.subr.bf16.mxu0 %v1948
  %2616 = vmatpush1.bf16.msra.mxu0 %v1947
  %2617 = vmatprep.subr.bf16.mxu0 %v1952
  %2618 = vmatpush1.bf16.msra.mxu0 %v1951
  %2619 = vmatprep.subr.bf16.mxu0 %v1956
  %2620 = vmatpush1.bf16.msra.mxu0 %v1955
  %2621 = vmatprep.subr.bf16.mxu0 %v1960
  %2622 = vmatpush1.bf16.msra.mxu0 %v1959
  %2623 = vmatprep.subr.bf16.mxu0 %v1964
  %2624 = vmatpush1.bf16.msra.mxu0 %v1963
  %2625 = vmatprep.subr.bf16.mxu0 %v1968
  %2626 = vmatpush1.bf16.msra.mxu0 %v1967
  %2627 = vmatprep.subr.bf16.mxu0 %v1972
  %2628 = vmatpush1.bf16.msra.mxu0 %v1971
  %2629 = vmatprep.subr.bf16.mxu0 %v1976
  %2630 = vmatpush1.bf16.msra.mxu0 %v1975
  %2631 = vmatprep.subr.bf16.mxu0 %v1980
  %2632 = vmatpush1.bf16.msra.mxu0 %v1979
  %2633 = vmatprep.mubr.bf16.mxu0 %v864
  %2634 = vmatmul.mubr.bf16.gmra.mrb[0].mxu0 %v863
  %v2635 = vpop.f32.mrb[0].mxu0
  %v2636 = vadd.f32 %v1140, %v2635
  %v2637 = vpop.f32.mrb[0].mxu0
  %v2638 = vadd.f32 %v1144, %v2637
  %v2639 = vpop.f32.mrb[0].mxu0
  %v2640 = vadd.f32 %v1140, %v2639
  %v2641 = vpop.f32.mrb[0].mxu0
  %v2642 = vadd.f32 %v1144, %v2641
  %2643 = vdwg.mxu0
  %2644 = vmatprep.subr.bf16.mxu0 %v1984
  %2645 = vmatpush1.bf16.msra.mxu0 %v1983
  %2646 = vmatprep.subr.bf16.mxu0 %v1988
  %2647 = vmatpush1.bf16.msra.mxu0 %v1987
  %2648 = vmatprep.subr.bf16.mxu0 %v1992
  %2649 = vmatpush1.bf16.msra.mxu0 %v1991
  %2650 = vmatprep.subr.bf16.mxu0 %v1996
  %2651 = vmatpush1.bf16.msra.mxu0 %v1995
  %2652 = vmatprep.subr.bf16.mxu0 %v2000
  %2653 = vmatpush1.bf16.msra.mxu0 %v1999
  %2654 = vmatprep.subr.bf16.mxu0 %v2004
  %2655 = vmatpush1.bf16.msra.mxu0 %v2003
  %2656 = vmatprep.subr.bf16.mxu0 %v2008
  %2657 = vmatpush1.bf16.msra.mxu0 %v2007
  %2658 = vmatprep.subr.bf16.mxu0 %v2012
  %2659 = vmatpush1.bf16.msra.mxu0 %v2011
  %2660 = vmatprep.subr.bf16.mxu0 %v2016
  %2661 = vmatpush1.bf16.msra.mxu0 %v2015
  %2662 = vmatprep.subr.bf16.mxu0 %v2020
  %2663 = vmatpush1.bf16.msra.mxu0 %v2019
  %2664 = vmatprep.subr.bf16.mxu0 %v2024
  %2665 = vmatpush1.bf16.msra.mxu0 %v2023
  %2666 = vmatprep.subr.bf16.mxu0 %v2028
  %2667 = vmatpush1.bf16.msra.mxu0 %v2027
  %2668 = vmatprep.subr.bf16.mxu0 %v2032
  %2669 = vmatpush1.bf16.msra.mxu0 %v2031
  %2670 = vmatprep.subr.bf16.mxu0 %v2036
  %2671 = vmatpush1.bf16.msra.mxu0 %v2035
  %2672 = vmatprep.subr.bf16.mxu0 %v2040
  %2673 = vmatpush1.bf16.msra.mxu0 %v2039
  %2674 = vmatprep.subr.bf16.mxu0 %v2044
  %2675 = vmatpush1.bf16.msra.mxu0 %v2043
  %2676 = vmatprep.mubr.bf16.mxu0 %v866
  %2677 = vmatmul.mubr.bf16.gmra.mrb[0].mxu0 %v865
  %v2678 = vpop.f32.mrb[0].mxu0
  %v2679 = vadd.f32 %v2636, %v2678
  %v2680 = vpop.f32.mrb[0].mxu0
  %v2681 = vadd.f32 %v2638, %v2680
  %v2682 = vpop.f32.mrb[0].mxu0
  %v2683 = vadd.f32 %v2640, %v2682
  %v2684 = vpop.f32.mrb[0].mxu0
  %v2685 = vadd.f32 %v2642, %v2684
  %2686 = vdwg.mxu0
  %2687 = vmatprep.subr.bf16.mxu0 %v2048
  %2688 = vmatpush1.bf16.msra.mxu0 %v2047
  %2689 = vmatprep.subr.bf16.mxu0 %v2052
  %2690 = vmatpush1.bf16.msra.mxu0 %v2051
  %2691 = vmatprep.subr.bf16.mxu0 %v2056
  %2692 = vmatpush1.bf16.msra.mxu0 %v2055
  %2693 = vmatprep.subr.bf16.mxu0 %v2060
  %2694 = vmatpush1.bf16.msra.mxu0 %v2059
  %2695 = vmatprep.subr.bf16.mxu0 %v2064
  %2696 = vmatpush1.bf16.msra.mxu0 %v2063
  %2697 = vmatprep.subr.bf16.mxu0 %v2068
  %2698 = vmatpush1.bf16.msra.mxu0 %v2067
  %2699 = vmatprep.subr.bf16.mxu0 %v2072
  %2700 = vmatpush1.bf16.msra.mxu0 %v2071
  %2701 = vmatprep.subr.bf16.mxu0 %v2076
  %2702 = vmatpush1.bf16.msra.mxu0 %v2075
  %2703 = vmatprep.subr.bf16.mxu0 %v2080
  %2704 = vmatpush1.bf16.msra.mxu0 %v2079
  %2705 = vmatprep.subr.bf16.mxu0 %v2084
  %2706 = vmatpush1.bf16.msra.mxu0 %v2083
  %2707 = vmatprep.subr.bf16.mxu0 %v2088
  %2708 = vmatpush1.bf16.msra.mxu0 %v2087
  %2709 = vmatprep.subr.bf16.mxu0 %v2092
  %2710 = vmatpush1.bf16.msra.mxu0 %v2091
  %2711 = vmatprep.subr.bf16.mxu0 %v2096
  %2712 = vmatpush1.bf16.msra.mxu0 %v2095
  %2713 = vmatprep.subr.bf16.mxu0 %v2100
  %2714 = vmatpush1.bf16.msra.mxu0 %v2099
  %2715 = vmatprep.subr.bf16.mxu0 %v2104
  %2716 = vmatpush1.bf16.msra.mxu0 %v2103
  %2717 = vmatprep.subr.bf16.mxu0 %v2108
  %2718 = vmatpush1.bf16.msra.mxu0 %v2107
  %2719 = vmatprep.mubr.bf16.mxu0 %v868
  %2720 = vmatmul.mubr.bf16.gmra.mrb[0].mxu0 %v867
  %v2721 = vpop.f32.mrb[0].mxu0
  %v2722 = vadd.f32 %v2679, %v2721
  %v2723 = vpop.f32.mrb[0].mxu0
  %v2724 = vadd.f32 %v2681, %v2723
  %v2725 = vpop.f32.mrb[0].mxu0
  %v2726 = vadd.f32 %v2683, %v2725
  %v2727 = vpop.f32.mrb[0].mxu0
  %v2728 = vadd.f32 %v2685, %v2727
  %2729 = vdwg.mxu0
  %2730 = vmatprep.subr.bf16.mxu0 %v2112
  %2731 = vmatpush1.bf16.msra.mxu0 %v2111
  %2732 = vmatprep.subr.bf16.mxu0 %v2116
  %2733 = vmatpush1.bf16.msra.mxu0 %v2115
  %2734 = vmatprep.subr.bf16.mxu0 %v2120
  %2735 = vmatpush1.bf16.msra.mxu0 %v2119
  %2736 = vmatprep.subr.bf16.mxu0 %v2124
  %2737 = vmatpush1.bf16.msra.mxu0 %v2123
  %2738 = vmatprep.subr.bf16.mxu0 %v2128
  %2739 = vmatpush1.bf16.msra.mxu0 %v2127
  %2740 = vmatprep.subr.bf16.mxu0 %v2132
  %2741 = vmatpush1.bf16.msra.mxu0 %v2131
  %2742 = vmatprep.subr.bf16.mxu0 %v2136
  %2743 = vmatpush1.bf16.msra.mxu0 %v2135
  %2744 = vmatprep.subr.bf16.mxu0 %v2140
  %2745 = vmatpush1.bf16.msra.mxu0 %v2139
  %2746 = vmatprep.subr.bf16.mxu0 %v2144
  %2747 = vmatpush1.bf16.msra.mxu0 %v2143
  %2748 = vmatprep.subr.bf16.mxu0 %v2148
  %2749 = vmatpush1.bf16.msra.mxu0 %v2147
  %2750 = vmatprep.subr.bf16.mxu0 %v2152
  %2751 = vmatpush1.bf16.msra.mxu0 %v2151
  %2752 = vmatprep.subr.bf16.mxu0 %v2156
  %2753 = vmatpush1.bf16.msra.mxu0 %v2155
  %2754 = vmatprep.subr.bf16.mxu0 %v2160
  %2755 = vmatpush1.bf16.msra.mxu0 %v2159
  %2756 = vmatprep.subr.bf16.mxu0 %v2164
  %2757 = vmatpush1.bf16.msra.mxu0 %v2163
  %2758 = vmatprep.subr.bf16.mxu0 %v2168
  %2759 = vmatpush1.bf16.msra.mxu0 %v2167
  %2760 = vmatprep.subr.bf16.mxu0 %v2172
  %2761 = vmatpush1.bf16.msra.mxu0 %v2171
  %2762 = vmatprep.mubr.bf16.mxu0 %v870
  %2763 = vmatmul.mubr.bf16.gmra.mrb[0].mxu0 %v869
  %v2764 = vpop.f32.mrb[0].mxu0
  %v2765 = vadd.f32 %v2722, %v2764
  %v2766 = vpop.f32.mrb[0].mxu0
  %v2767 = vadd.f32 %v2724, %v2766
  %v2768 = vpop.f32.mrb[0].mxu0
  %v2769 = vadd.f32 %v2726, %v2768
  %v2770 = vpop.f32.mrb[0].mxu0
  %v2771 = vadd.f32 %v2728, %v2770
  %2772 = vdwg.mxu0
  %v2773 = vmul.f32 %v2593, 0.2
  %v2774 = vmul.f32 %v2595, 0.2
  %v2775 = vmul.f32 %v2765, 0.2
  %v2776 = vmul.f32 %v2767, 0.2
  %v2777 = vmul.f32 %v2597, 0.2
  %v2778 = vmul.f32 %v2599, 0.2
  %v2779 = vmul.f32 %v2769, 0.2
  %v2780 = vmul.f32 %v2771, 0.2
  %v2781 = vmax.f32 %v2593, %v2773
  %v2782 = vmax.f32 %v2595, %v2774
  %v2783 = vmax.f32 %v2765, %v2775
  %v2784 = vmax.f32 %v2767, %v2776
  %v2785 = vmax.f32 %v2597, %v2777
  %v2786 = vmax.f32 %v2599, %v2778
  %v2787 = vmax.f32 %v2769, %v2779
  %v2788 = vmax.f32 %v2771, %v2780
  %v2789 = vpack.c.bf16 %v2785, %v2781
  %v2790 = vpack.c.bf16 %v2786, %v2782
  %v2791 = vpack.c.bf16 %v2787, %v2783
  %v2792 = vpack.c.bf16 %v2788, %v2784
  %v2793 = vld [vmem:[%s6] sm:$0xff]
  %v2794 = vld [vmem:[%s6 + $0x8] sm:$0xff]
  %v2795 = vld [vmem:[%s6 + $0x10] sm:$0xff]
  %v2796 = vld [vmem:[%s6 + $0x18] sm:$0xff]
  %v2797 = vld [vmem:[%s6 + $0x20] sm:$0xff]
  %v2798 = vld [vmem:[%s6 + $0x28] sm:$0xff]
  %v2799 = vld [vmem:[%s6 + $0x30] sm:$0xff]
  %v2800 = vld [vmem:[%s6 + $0x38] sm:$0xff]
  %v2801 = vld [vmem:[%s6 + $0x40] sm:$0xff]
  %v2802 = vld [vmem:[%s6 + $0x48] sm:$0xff]
  %v2803 = vld [vmem:[%s6 + $0x50] sm:$0xff]
  %v2804 = vld [vmem:[%s6 + $0x58] sm:$0xff]
  %v2805 = vld [vmem:[%s6 + $0x60] sm:$0xff]
  %v2806 = vld [vmem:[%s6 + $0x68] sm:$0xff]
  %v2807 = vld [vmem:[%s6 + $0x70] sm:$0xff]
  %v2808 = vld [vmem:[%s6 + $0x78] sm:$0xff]
  %v2809 = vld [vmem:[%s6 + $0x80] sm:$0xff]
  %v2810 = vld [vmem:[%s6 + $0x88] sm:$0xff]
  %v2811 = vld [vmem:[%s6 + $0x90] sm:$0xff]
  %v2812 = vld [vmem:[%s6 + $0x98] sm:$0xff]
  %v2813 = vld [vmem:[%s6 + $0xa0] sm:$0xff]
  %v2814 = vld [vmem:[%s6 + $0xa8] sm:$0xff]
  %v2815 = vld [vmem:[%s6 + $0xb0] sm:$0xff]
  %v2816 = vld [vmem:[%s6 + $0xb8] sm:$0xff]
  %v2817 = vld [vmem:[%s6 + $0xc0] sm:$0xff]
  %v2818 = vld [vmem:[%s6 + $0xc8] sm:$0xff]
  %v2819 = vld [vmem:[%s6 + $0xd0] sm:$0xff]
  %v2820 = vld [vmem:[%s6 + $0xd8] sm:$0xff]
  %v2821 = vld [vmem:[%s6 + $0xe0] sm:$0xff]
  %v2822 = vld [vmem:[%s6 + $0xe8] sm:$0xff]
  %v2823 = vld [vmem:[%s6 + $0xf0] sm:$0xff]
  %v2824 = vld [vmem:[%s6 + $0xf8] sm:$0xff]
  %v2825 = vld [vmem:[%s6 + $0x100] sm:$0xff]
  %v2826 = vld [vmem:[%s6 + $0x108] sm:$0xff]
  %v2827 = vld [vmem:[%s6 + $0x110] sm:$0xff]
  %v2828 = vld [vmem:[%s6 + $0x118] sm:$0xff]
  %v2829 = vld [vmem:[%s6 + $0x120] sm:$0xff]
  %v2830 = vld [vmem:[%s6 + $0x128] sm:$0xff]
  %v2831 = vld [vmem:[%s6 + $0x130] sm:$0xff]
  %v2832 = vld [vmem:[%s6 + $0x138] sm:$0xff]
  %v2833 = vld [vmem:[%s6 + $0x140] sm:$0xff]
  %v2834 = vld [vmem:[%s6 + $0x148] sm:$0xff]
  %v2835 = vld [vmem:[%s6 + $0x150] sm:$0xff]
  %v2836 = vld [vmem:[%s6 + $0x158] sm:$0xff]
  %v2837 = vld [vmem:[%s6 + $0x160] sm:$0xff]
  %v2838 = vld [vmem:[%s6 + $0x168] sm:$0xff]
  %v2839 = vld [vmem:[%s6 + $0x170] sm:$0xff]
  %v2840 = vld [vmem:[%s6 + $0x178] sm:$0xff]
  %v2841 = vld [vmem:[%s6 + $0x180] sm:$0xff]
  %v2842 = vld [vmem:[%s6 + $0x188] sm:$0xff]
  %v2843 = vld [vmem:[%s6 + $0x190] sm:$0xff]
  %v2844 = vld [vmem:[%s6 + $0x198] sm:$0xff]
  %v2845 = vld [vmem:[%s6 + $0x1a0] sm:$0xff]
  %v2846 = vld [vmem:[%s6 + $0x1a8] sm:$0xff]
  %v2847 = vld [vmem:[%s6 + $0x1b0] sm:$0xff]
  %v2848 = vld [vmem:[%s6 + $0x1b8] sm:$0xff]
  %v2849 = vld [vmem:[%s6 + $0x1c0] sm:$0xff]
  %v2850 = vld [vmem:[%s6 + $0x1c8] sm:$0xff]
  %v2851 = vld [vmem:[%s6 + $0x1d0] sm:$0xff]
  %v2852 = vld [vmem:[%s6 + $0x1d8] sm:$0xff]
  %v2853 = vld [vmem:[%s6 + $0x1e0] sm:$0xff]
  %v2854 = vld [vmem:[%s6 + $0x1e8] sm:$0xff]
  %v2855 = vld [vmem:[%s6 + $0x1f0] sm:$0xff]
  %v2856 = vld [vmem:[%s6 + $0x1f8] sm:$0xff]
  %v2857 = vld [vmem:[%s7] sm:$0x3]
  %v2859 = vlaneseq
  %v2860 = vshrl.u32 %v2859, 7
  %v2861 = vsub.s32 0, %v2860
  %v2862 = vrot.slane %v2857, %v2861
  %v2863 = vlaneseq
  %v2864 = vshrl.u32 %v2863, 7
  %v2865 = vsub.s32 1, %v2864
  %v2866 = vrot.slane %v2857, %v2865
  %v2933 = vunpack.c.l.b16 %v2793
  %v2934 = vunpack.c.h.b16 %v2793
  %v2935 = vunpack.c.l.b16 %v2794
  %v2936 = vunpack.c.h.b16 %v2794
  %v2937 = vunpack.c.l.b16 %v2795
  %v2938 = vunpack.c.h.b16 %v2795
  %v2939 = vunpack.c.l.b16 %v2796
  %v2940 = vunpack.c.h.b16 %v2796
  %v2941 = vunpack.c.l.b16 %v2797
  %v2942 = vunpack.c.h.b16 %v2797
  %v2943 = vunpack.c.l.b16 %v2798
  %v2944 = vunpack.c.h.b16 %v2798
  %v2945 = vunpack.c.l.b16 %v2799
  %v2946 = vunpack.c.h.b16 %v2799
  %v2947 = vunpack.c.l.b16 %v2800
  %v2948 = vunpack.c.h.b16 %v2800
  %v2949 = vunpack.c.l.b16 %v2801
  %v2950 = vunpack.c.h.b16 %v2801
  %v2951 = vunpack.c.l.b16 %v2802
  %v2952 = vunpack.c.h.b16 %v2802
  %v2953 = vunpack.c.l.b16 %v2803
  %v2954 = vunpack.c.h.b16 %v2803
  %v2955 = vunpack.c.l.b16 %v2804
  %v2956 = vunpack.c.h.b16 %v2804
  %v2957 = vunpack.c.l.b16 %v2805
  %v2958 = vunpack.c.h.b16 %v2805
  %v2959 = vunpack.c.l.b16 %v2806
  %v2960 = vunpack.c.h.b16 %v2806
  %v2961 = vunpack.c.l.b16 %v2807
  %v2962 = vunpack.c.h.b16 %v2807
  %v2963 = vunpack.c.l.b16 %v2808
  %v2964 = vunpack.c.h.b16 %v2808
  %v2965 = vunpack.c.l.b16 %v2809
  %v2966 = vunpack.c.h.b16 %v2809
  %v2967 = vunpack.c.l.b16 %v2810
  %v2968 = vunpack.c.h.b16 %v2810
  %v2969 = vunpack.c.l.b16 %v2811
  %v2970 = vunpack.c.h.b16 %v2811
  %v2971 = vunpack.c.l.b16 %v2812
  %v2972 = vunpack.c.h.b16 %v2812
  %v2973 = vunpack.c.l.b16 %v2813
  %v2974 = vunpack.c.h.b16 %v2813
  %v2975 = vunpack.c.l.b16 %v2814
  %v2976 = vunpack.c.h.b16 %v2814
  %v2977 = vunpack.c.l.b16 %v2815
  %v2978 = vunpack.c.h.b16 %v2815
  %v2979 = vunpack.c.l.b16 %v2816
  %v2980 = vunpack.c.h.b16 %v2816
  %v2981 = vunpack.c.l.b16 %v2817
  %v2982 = vunpack.c.h.b16 %v2817
  %v2983 = vunpack.c.l.b16 %v2818
  %v2984 = vunpack.c.h.b16 %v2818
  %v2985 = vunpack.c.l.b16 %v2819
  %v2986 = vunpack.c.h.b16 %v2819
  %v2987 = vunpack.c.l.b16 %v2820
  %v2988 = vunpack.c.h.b16 %v2820
  %v2989 = vunpack.c.l.b16 %v2821
  %v2990 = vunpack.c.h.b16 %v2821
  %v2991 = vunpack.c.l.b16 %v2822
  %v2992 = vunpack.c.h.b16 %v2822
  %v2993 = vunpack.c.l.b16 %v2823
  %v2994 = vunpack.c.h.b16 %v2823
  %v2995 = vunpack.c.l.b16 %v2824
  %v2996 = vunpack.c.h.b16 %v2824
  %v2997 = vunpack.c.l.b16 %v2825
  %v2998 = vunpack.c.h.b16 %v2825
  %v2999 = vunpack.c.l.b16 %v2826
  %v3000 = vunpack.c.h.b16 %v2826
  %v3001 = vunpack.c.l.b16 %v2827
  %v3002 = vunpack.c.h.b16 %v2827
  %v3003 = vunpack.c.l.b16 %v2828
  %v3004 = vunpack.c.h.b16 %v2828
  %v3005 = vunpack.c.l.b16 %v2829
  %v3006 = vunpack.c.h.b16 %v2829
  %v3007 = vunpack.c.l.b16 %v2830
  %v3008 = vunpack.c.h.b16 %v2830
  %v3009 = vunpack.c.l.b16 %v2831
  %v3010 = vunpack.c.h.b16 %v2831
  %v3011 = vunpack.c.l.b16 %v2832
  %v3012 = vunpack.c.h.b16 %v2832
  %v3013 = vunpack.c.l.b16 %v2833
  %v3014 = vunpack.c.h.b16 %v2833
  %v3015 = vunpack.c.l.b16 %v2834
  %v3016 = vunpack.c.h.b16 %v2834
  %v3017 = vunpack.c.l.b16 %v2835
  %v3018 = vunpack.c.h.b16 %v2835
  %v3019 = vunpack.c.l.b16 %v2836
  %v3020 = vunpack.c.h.b16 %v2836
  %v3021 = vunpack.c.l.b16 %v2837
  %v3022 = vunpack.c.h.b16 %v2837
  %v3023 = vunpack.c.l.b16 %v2838
  %v3024 = vunpack.c.h.b16 %v2838
  %v3025 = vunpack.c.l.b16 %v2839
  %v3026 = vunpack.c.h.b16 %v2839
  %v3027 = vunpack.c.l.b16 %v2840
  %v3028 = vunpack.c.h.b16 %v2840
  %v3029 = vunpack.c.l.b16 %v2841
  %v3030 = vunpack.c.h.b16 %v2841
  %v3031 = vunpack.c.l.b16 %v2842
  %v3032 = vunpack.c.h.b16 %v2842
  %v3033 = vunpack.c.l.b16 %v2843
  %v3034 = vunpack.c.h.b16 %v2843
  %v3035 = vunpack.c.l.b16 %v2844
  %v3036 = vunpack.c.h.b16 %v2844
  %v3037 = vunpack.c.l.b16 %v2845
  %v3038 = vunpack.c.h.b16 %v2845
  %v3039 = vunpack.c.l.b16 %v2846
  %v3040 = vunpack.c.h.b16 %v2846
  %v3041 = vunpack.c.l.b16 %v2847
  %v3042 = vunpack.c.h.b16 %v2847
  %v3043 = vunpack.c.l.b16 %v2848
  %v3044 = vunpack.c.h.b16 %v2848
  %v3045 = vunpack.c.l.b16 %v2849
  %v3046 = vunpack.c.h.b16 %v2849
  %v3047 = vunpack.c.l.b16 %v2850
  %v3048 = vunpack.c.h.b16 %v2850
  %v3049 = vunpack.c.l.b16 %v2851
  %v3050 = vunpack.c.h.b16 %v2851
  %v3051 = vunpack.c.l.b16 %v2852
  %v3052 = vunpack.c.h.b16 %v2852
  %v3053 = vunpack.c.l.b16 %v2853
  %v3054 = vunpack.c.h.b16 %v2853
  %v3055 = vunpack.c.l.b16 %v2854
  %v3056 = vunpack.c.h.b16 %v2854
  %v3057 = vunpack.c.l.b16 %v2855
  %v3058 = vunpack.c.h.b16 %v2855
  %v3059 = vunpack.c.l.b16 %v2856
  %v3060 = vunpack.c.h.b16 %v2856
  %v3061 = vpack.c.b16 %v2935, %v2933
  %v3062 = vpack.c.b16 %v2936, %v2934
  %v3063 = vpack.c.b16 %v2939, %v2937
  %v3064 = vpack.c.b16 %v2940, %v2938
  %v3065 = vpack.c.b16 %v2943, %v2941
  %v3066 = vpack.c.b16 %v2944, %v2942
  %v3067 = vpack.c.b16 %v2947, %v2945
  %v3068 = vpack.c.b16 %v2948, %v2946
  %v3069 = vpack.c.b16 %v2951, %v2949
  %v3070 = vpack.c.b16 %v2952, %v2950
  %v3071 = vpack.c.b16 %v2955, %v2953
  %v3072 = vpack.c.b16 %v2956, %v2954
  %v3073 = vpack.c.b16 %v2959, %v2957
  %v3074 = vpack.c.b16 %v2960, %v2958
  %v3075 = vpack.c.b16 %v2963, %v2961
  %v3076 = vpack.c.b16 %v2964, %v2962
  %v3077 = vpack.c.b16 %v2967, %v2965
  %v3078 = vpack.c.b16 %v2968, %v2966
  %v3079 = vpack.c.b16 %v2971, %v2969
  %v3080 = vpack.c.b16 %v2972, %v2970
  %v3081 = vpack.c.b16 %v2975, %v2973
  %v3082 = vpack.c.b16 %v2976, %v2974
  %v3083 = vpack.c.b16 %v2979, %v2977
  %v3084 = vpack.c.b16 %v2980, %v2978
  %v3085 = vpack.c.b16 %v2983, %v2981
  %v3086 = vpack.c.b16 %v2984, %v2982
  %v3087 = vpack.c.b16 %v2987, %v2985
  %v3088 = vpack.c.b16 %v2988, %v2986
  %v3089 = vpack.c.b16 %v2991, %v2989
  %v3090 = vpack.c.b16 %v2992, %v2990
  %v3091 = vpack.c.b16 %v2995, %v2993
  %v3092 = vpack.c.b16 %v2996, %v2994
  %v3093 = vpack.c.b16 %v2999, %v2997
  %v3094 = vpack.c.b16 %v3000, %v2998
  %v3095 = vpack.c.b16 %v3003, %v3001
  %v3096 = vpack.c.b16 %v3004, %v3002
  %v3097 = vpack.c.b16 %v3007, %v3005
  %v3098 = vpack.c.b16 %v3008, %v3006
  %v3099 = vpack.c.b16 %v3011, %v3009
  %v3100 = vpack.c.b16 %v3012, %v3010
  %v3101 = vpack.c.b16 %v3015, %v3013
  %v3102 = vpack.c.b16 %v3016, %v3014
  %v3103 = vpack.c.b16 %v3019, %v3017
  %v3104 = vpack.c.b16 %v3020, %v3018
  %v3105 = vpack.c.b16 %v3023, %v3021
  %v3106 = vpack.c.b16 %v3024, %v3022
  %v3107 = vpack.c.b16 %v3027, %v3025
  %v3108 = vpack.c.b16 %v3028, %v3026
  %v3109 = vpack.c.b16 %v3031, %v3029
  %v3110 = vpack.c.b16 %v3032, %v3030
  %v3111 = vpack.c.b16 %v3035, %v3033
  %v3112 = vpack.c.b16 %v3036, %v3034
  %v3113 = vpack.c.b16 %v3039, %v3037
  %v3114 = vpack.c.b16 %v3040, %v3038
  %v3115 = vpack.c.b16 %v3043, %v3041
  %v3116 = vpack.c.b16 %v3044, %v3042
  %v3117 = vpack.c.b16 %v3047, %v3045
  %v3118 = vpack.c.b16 %v3048, %v3046
  %v3119 = vpack.c.b16 %v3051, %v3049
  %v3120 = vpack.c.b16 %v3052, %v3050
  %v3121 = vpack.c.b16 %v3055, %v3053
  %v3122 = vpack.c.b16 %v3056, %v3054
  %v3123 = vpack.c.b16 %v3059, %v3057
  %v3124 = vpack.c.b16 %v3060, %v3058
  %3189 = vmatprep.subr.bf16.mxu0 %v3062
  %3190 = vmatpush1.bf16.msra.mxu0 %v3061
  %3191 = vmatprep.subr.bf16.mxu0 %v3064
  %3192 = vmatpush1.bf16.msra.mxu0 %v3063
  %3193 = vmatprep.subr.bf16.mxu0 %v3066
  %3194 = vmatpush1.bf16.msra.mxu0 %v3065
  %3195 = vmatprep.subr.bf16.mxu0 %v3068
  %3196 = vmatpush1.bf16.msra.mxu0 %v3067
  %3197 = vmatprep.subr.bf16.mxu0 %v3070
  %3198 = vmatpush1.bf16.msra.mxu0 %v3069
  %3199 = vmatprep.subr.bf16.mxu0 %v3072
  %3200 = vmatpush1.bf16.msra.mxu0 %v3071
  %3201 = vmatprep.subr.bf16.mxu0 %v3074
  %3202 = vmatpush1.bf16.msra.mxu0 %v3073
  %3203 = vmatprep.subr.bf16.mxu0 %v3076
  %3204 = vmatpush1.bf16.msra.mxu0 %v3075
  %3205 = vmatprep.subr.bf16.mxu0 %v3078
  %3206 = vmatpush1.bf16.msra.mxu0 %v3077
  %3207 = vmatprep.subr.bf16.mxu0 %v3080
  %3208 = vmatpush1.bf16.msra.mxu0 %v3079
  %3209 = vmatprep.subr.bf16.mxu0 %v3082
  %3210 = vmatpush1.bf16.msra.mxu0 %v3081
  %3211 = vmatprep.subr.bf16.mxu0 %v3084
  %3212 = vmatpush1.bf16.msra.mxu0 %v3083
  %3213 = vmatprep.subr.bf16.mxu0 %v3086
  %3214 = vmatpush1.bf16.msra.mxu0 %v3085
  %3215 = vmatprep.subr.bf16.mxu0 %v3088
  %3216 = vmatpush1.bf16.msra.mxu0 %v3087
  %3217 = vmatprep.subr.bf16.mxu0 %v3090
  %3218 = vmatpush1.bf16.msra.mxu0 %v3089
  %3219 = vmatprep.subr.bf16.mxu0 %v3092
  %3220 = vmatpush1.bf16.msra.mxu0 %v3091
  %3221 = vmatprep.mubr.bf16.mxu0 %v2790
  %3222 = vmatmul.mubr.bf16.gmra.mrb[0].mxu0 %v2789
  %v3223 = vpop.f32.mrb[0].mxu0
  %v3224 = vadd.f32 %v2862, %v3223
  %v3225 = vpop.f32.mrb[0].mxu0
  %v3226 = vadd.f32 %v2866, %v3225
  %v3227 = vpop.f32.mrb[0].mxu0
  %v3228 = vadd.f32 %v2862, %v3227
  %v3229 = vpop.f32.mrb[0].mxu0
  %v3230 = vadd.f32 %v2866, %v3229
  %3231 = vdwg.mxu0
  %3232 = vmatprep.subr.bf16.mxu0 %v3094
  %3233 = vmatpush1.bf16.msra.mxu0 %v3093
  %3234 = vmatprep.subr.bf16.mxu0 %v3096
  %3235 = vmatpush1.bf16.msra.mxu0 %v3095
  %3236 = vmatprep.subr.bf16.mxu0 %v3098
  %3237 = vmatpush1.bf16.msra.mxu0 %v3097
  %3238 = vmatprep.subr.bf16.mxu0 %v3100
  %3239 = vmatpush1.bf16.msra.mxu0 %v3099
  %3240 = vmatprep.subr.bf16.mxu0 %v3102
  %3241 = vmatpush1.bf16.msra.mxu0 %v3101
  %3242 = vmatprep.subr.bf16.mxu0 %v3104
  %3243 = vmatpush1.bf16.msra.mxu0 %v3103
  %3244 = vmatprep.subr.bf16.mxu0 %v3106
  %3245 = vmatpush1.bf16.msra.mxu0 %v3105
  %3246 = vmatprep.subr.bf16.mxu0 %v3108
  %3247 = vmatpush1.bf16.msra.mxu0 %v3107
  %3248 = vmatprep.subr.bf16.mxu0 %v3110
  %3249 = vmatpush1.bf16.msra.mxu0 %v3109
  %3250 = vmatprep.subr.bf16.mxu0 %v3112
  %3251 = vmatpush1.bf16.msra.mxu0 %v3111
  %3252 = vmatprep.subr.bf16.mxu0 %v3114
  %3253 = vmatpush1.bf16.msra.mxu0 %v3113
  %3254 = vmatprep.subr.bf16.mxu0 %v3116
  %3255 = vmatpush1.bf16.msra.mxu0 %v3115
  %3256 = vmatprep.subr.bf16.mxu0 %v3118
  %3257 = vmatpush1.bf16.msra.mxu0 %v3117
  %3258 = vmatprep.subr.bf16.mxu0 %v3120
  %3259 = vmatpush1.bf16.msra.mxu0 %v3119
  %3260 = vmatprep.subr.bf16.mxu0 %v3122
  %3261 = vmatpush1.bf16.msra.mxu0 %v3121
  %3262 = vmatprep.subr.bf16.mxu0 %v3124
  %3263 = vmatpush1.bf16.msra.mxu0 %v3123
  %3264 = vmatprep.mubr.bf16.mxu0 %v2792
  %3265 = vmatmul.mubr.bf16.gmra.mrb[0].mxu0 %v2791
  %v3266 = vpop.f32.mrb[0].mxu0
  %v3267 = vadd.f32 %v3224, %v3266
  %v3268 = vpop.f32.mrb[0].mxu0
  %v3269 = vadd.f32 %v3226, %v3268
  %v3270 = vpop.f32.mrb[0].mxu0
  %v3271 = vadd.f32 %v3228, %v3270
  %v3272 = vpop.f32.mrb[0].mxu0
  %v3273 = vadd.f32 %v3230, %v3272
  %3274 = vdwg.mxu0
  %v3275 = vmul.f32 %v3267, 0.2
  %v3276 = vmul.f32 %v3269, 0.2
  %v3277 = vmul.f32 %v3271, 0.2
  %v3278 = vmul.f32 %v3273, 0.2
  %v3279 = vmax.f32 %v3267, %v3275
  %v3280 = vmax.f32 %v3269, %v3276
  %v3281 = vmax.f32 %v3271, %v3277
  %v3282 = vmax.f32 %v3273, %v3278
  %v3283 = vpack.c.bf16 %v3281, %v3279
  %v3284 = vpack.c.bf16 %v3282, %v3280
  %v3285 = vld [vmem:[%s8] sm:$0xf]
  %v3286 = vld [vmem:[%s8 + $0x4] sm:$0xf]
  %v3287 = vld [vmem:[%s8 + $0x8] sm:$0xf]
  %v3288 = vld [vmem:[%s8 + $0xc] sm:$0xf]
  %v3289 = vld [vmem:[%s8 + $0x10] sm:$0xf]
  %v3290 = vld [vmem:[%s8 + $0x14] sm:$0xf]
  %v3291 = vld [vmem:[%s8 + $0x18] sm:$0xf]
  %v3292 = vld [vmem:[%s8 + $0x1c] sm:$0xf]
  %v3293 = vld [vmem:[%s8 + $0x20] sm:$0xf]
  %v3294 = vld [vmem:[%s8 + $0x24] sm:$0xf]
  %v3295 = vld [vmem:[%s8 + $0x28] sm:$0xf]
  %v3296 = vld [vmem:[%s8 + $0x2c] sm:$0xf]
  %v3297 = vld [vmem:[%s8 + $0x30] sm:$0xf]
  %v3298 = vld [vmem:[%s8 + $0x34] sm:$0xf]
  %v3299 = vld [vmem:[%s8 + $0x38] sm:$0xf]
  %v3300 = vld [vmem:[%s8 + $0x3c] sm:$0xf]
  %v3301 = vld [vmem:[%s8 + $0x40] sm:$0xf]
  %v3302 = vld [vmem:[%s8 + $0x44] sm:$0xf]
  %v3303 = vld [vmem:[%s8 + $0x48] sm:$0xf]
  %v3304 = vld [vmem:[%s8 + $0x4c] sm:$0xf]
  %v3305 = vld [vmem:[%s8 + $0x50] sm:$0xf]
  %v3306 = vld [vmem:[%s8 + $0x54] sm:$0xf]
  %v3307 = vld [vmem:[%s8 + $0x58] sm:$0xf]
  %v3308 = vld [vmem:[%s8 + $0x5c] sm:$0xf]
  %v3309 = vld [vmem:[%s8 + $0x60] sm:$0xf]
  %v3310 = vld [vmem:[%s8 + $0x64] sm:$0xf]
  %v3311 = vld [vmem:[%s8 + $0x68] sm:$0xf]
  %v3312 = vld [vmem:[%s8 + $0x6c] sm:$0xf]
  %v3313 = vld [vmem:[%s8 + $0x70] sm:$0xf]
  %v3314 = vld [vmem:[%s8 + $0x74] sm:$0xf]
  %v3315 = vld [vmem:[%s8 + $0x78] sm:$0xf]
  %v3316 = vld [vmem:[%s8 + $0x7c] sm:$0xf]
  %v3317 = vld [vmem:[%s9] sm:$0x1]
  %v3319 = vlaneseq
  %v3320 = vshrl.u32 %v3319, 7
  %v3321 = vsub.s32 0, %v3320
  %v3322 = vrot.slane %v3317, %v3321
  %v3356 = vunpack.c.l.b16 %v3285
  %v3357 = vunpack.c.l.b16 %v3286
  %v3358 = vunpack.c.l.b16 %v3287
  %v3359 = vunpack.c.l.b16 %v3288
  %v3360 = vunpack.c.l.b16 %v3289
  %v3361 = vunpack.c.l.b16 %v3290
  %v3362 = vunpack.c.l.b16 %v3291
  %v3363 = vunpack.c.l.b16 %v3292
  %v3364 = vunpack.c.l.b16 %v3293
  %v3365 = vunpack.c.l.b16 %v3294
  %v3366 = vunpack.c.l.b16 %v3295
  %v3367 = vunpack.c.l.b16 %v3296
  %v3368 = vunpack.c.l.b16 %v3297
  %v3369 = vunpack.c.l.b16 %v3298
  %v3370 = vunpack.c.l.b16 %v3299
  %v3371 = vunpack.c.l.b16 %v3300
  %v3372 = vunpack.c.l.b16 %v3301
  %v3373 = vunpack.c.l.b16 %v3302
  %v3374 = vunpack.c.l.b16 %v3303
  %v3375 = vunpack.c.l.b16 %v3304
  %v3376 = vunpack.c.l.b16 %v3305
  %v3377 = vunpack.c.l.b16 %v3306
  %v3378 = vunpack.c.l.b16 %v3307
  %v3379 = vunpack.c.l.b16 %v3308
  %v3380 = vunpack.c.l.b16 %v3309
  %v3381 = vunpack.c.l.b16 %v3310
  %v3382 = vunpack.c.l.b16 %v3311
  %v3383 = vunpack.c.l.b16 %v3312
  %v3384 = vunpack.c.l.b16 %v3313
  %v3385 = vunpack.c.l.b16 %v3314
  %v3386 = vunpack.c.l.b16 %v3315
  %v3387 = vunpack.c.l.b16 %v3316
  %v3388 = vpack.c.b16 %v3357, %v3356
  %v3389 = vpack.c.b16 %v3359, %v3358
  %v3390 = vpack.c.b16 %v3361, %v3360
  %v3391 = vpack.c.b16 %v3363, %v3362
  %v3392 = vpack.c.b16 %v3365, %v3364
  %v3393 = vpack.c.b16 %v3367, %v3366
  %v3394 = vpack.c.b16 %v3369, %v3368
  %v3395 = vpack.c.b16 %v3371, %v3370
  %v3396 = vpack.c.b16 %v3373, %v3372
  %v3397 = vpack.c.b16 %v3375, %v3374
  %v3398 = vpack.c.b16 %v3377, %v3376
  %v3399 = vpack.c.b16 %v3379, %v3378
  %v3400 = vpack.c.b16 %v3381, %v3380
  %v3401 = vpack.c.b16 %v3383, %v3382
  %v3402 = vpack.c.b16 %v3385, %v3384
  %v3403 = vpack.c.b16 %v3387, %v3386
  %3420 = vmatprep.subr.bf16.mxu0 0
  %3421 = vmatpush1.bf16.msra.mxu0 %v3388
  %3422 = vmatprep.subr.bf16.mxu0 0
  %3423 = vmatpush1.bf16.msra.mxu0 %v3389
  %3424 = vmatprep.subr.bf16.mxu0 0
  %3425 = vmatpush1.bf16.msra.mxu0 %v3390
  %3426 = vmatprep.subr.bf16.mxu0 0
  %3427 = vmatpush1.bf16.msra.mxu0 %v3391
  %3428 = vmatprep.subr.bf16.mxu0 0
  %3429 = vmatpush1.bf16.msra.mxu0 %v3392
  %3430 = vmatprep.subr.bf16.mxu0 0
  %3431 = vmatpush1.bf16.msra.mxu0 %v3393
  %3432 = vmatprep.subr.bf16.mxu0 0
  %3433 = vmatpush1.bf16.msra.mxu0 %v3394
  %3434 = vmatprep.subr.bf16.mxu0 0
  %3435 = vmatpush1.bf16.msra.mxu0 %v3395
  %3436 = vmatprep.subr.bf16.mxu0 0
  %3437 = vmatpush1.bf16.msra.mxu0 %v3396
  %3438 = vmatprep.subr.bf16.mxu0 0
  %3439 = vmatpush1.bf16.msra.mxu0 %v3397
  %3440 = vmatprep.subr.bf16.mxu0 0
  %3441 = vmatpush1.bf16.msra.mxu0 %v3398
  %3442 = vmatprep.subr.bf16.mxu0 0
  %3443 = vmatpush1.bf16.msra.mxu0 %v3399
  %3444 = vmatprep.subr.bf16.mxu0 0
  %3445 = vmatpush1.bf16.msra.mxu0 %v3400
  %3446 = vmatprep.subr.bf16.mxu0 0
  %3447 = vmatpush1.bf16.msra.mxu0 %v3401
  %3448 = vmatprep.subr.bf16.mxu0 0
  %3449 = vmatpush1.bf16.msra.mxu0 %v3402
  %3450 = vmatprep.subr.bf16.mxu0 0
  %3451 = vmatpush1.bf16.msra.mxu0 %v3403
  %3452 = vmatprep.mubr.bf16.mxu0 %v3284
  %3453 = vmatmul.mubr.bf16.gmra.mrb[0].mxu0 %v3283
  %v3454 = vpop.f32.mrb[0].mxu0
  %v3455 = vadd.f32 %v3322, %v3454
  %v3456 = vpop.f32.mrb[0].mxu0
  %v3457 = vpop.f32.mrb[0].mxu0
  %v3458 = vadd.f32 %v3322, %v3457
  %v3459 = vpop.f32.mrb[0].mxu0
  %3460 = vdwg.mxu0
  %v3461 = vsub.f32 0.0, %v3455
  %v3462 = vsub.f32 0.0, %v3458
  %v3463 = vmul.f32 %v3461, 1.442695
  %v3464 = vpow.pop %v3463
  %v3465 = vmul.f32 %v3462, 1.442695
  %v3466 = vpow.pop %v3465
  %v3467 = vadd.f32 %v3464, 1.0
  %v3468 = vadd.f32 %v3466, 1.0
  %v3469 = vrcp.pop %v3467
  %v3470 = vrcp.pop %v3468
  %v3471 = vpack.c.bf16 %v3470, %v3469
  %v3473 = vunpack.c.l.b16 %v3471
  %v3474 = vunpack.c.h.b16 %v3471
  %v3475 = vpack.c.b16 %v3473, %v3473
  %v3476 = vpack.c.b16 %v3474, %v3474
  %3479 = vst [vmem:[%s10] sm:$0xf] %v3475
  %3480 = vst [vmem:[%s10 + $0x4] sm:$0xf] %v3476
  // Predicated region
  $region42: #{cond_discriminator_forward.1} parent=0 // pred_check
    _
  $region43: #{cond_discriminator_forward.1} parent=0 // pred_check_branch
    %3482 = sbr.rel (0) target = $region45
  $region44: #{cond_discriminator_forward.1} parent=0 // pred_region
    _
  $region45: #{cond_discriminator_forward.1} parent=0 // pred_fallthru
    _
  // Predicated region
  $region46: #{cond_discriminator_forward.1} parent=0 // pred_check
    _
  $region47: #{cond_discriminator_forward.1} parent=0 // pred_check_branch
    %3484 = sbr.rel (0) target = $region49
  $region48: #{cond_discriminator_forward.1} parent=0 // pred_region
    _
  $region49: #{cond_discriminator_forward.1} parent=0 // pred_fallthru
    _

</llo_original>
